<compile_context>
chip_gen: v7x
topology: tpu7x:2x2x1
jax: 0.10.0
libtpu: 0.0.40
codegen_flags: <defaults>
</compile_context>

<pallas_src>
import math
import jax
import jax.numpy as jnp
from jax.experimental import pallas as pl
from jax.experimental.pallas import tpu as pltpu

EPS = 1e-5


def _graph_conv(x, w, adj_w, bias_nf):
    # x: (B,N,F); w: (F,F); adj_w: (N,N) == att*mask ; bias_nf: (N,F)
    support = jnp.einsum('bnf,fg->bng', x, w, preferred_element_type=jnp.float32)
    mup = jnp.einsum('bnf,bmf->bnm', x, x, preferred_element_type=jnp.float32)
    sq = jnp.sum(x * x, axis=-1)                       # (B,N) lane reduce -> XLU
    inv = jax.lax.rsqrt(sq)                            # EUP slot; inf when norm==0
    wcos = mup * (inv[:, :, None] * inv[:, None, :])   # (B,N,N) cosine similarity
    adj = adj_w[None, :, :] * wcos                     # (B,N,N)
    out = jnp.einsum('bnm,bmg->bng', adj, support, preferred_element_type=jnp.float32)
    return out + bias_nf[None, :, :]


def _batchnorm_train(y, gamma, beta):
    # BatchNorm1d over flattened (N*F) features == per-(n,f) stats over batch dim.
    mean = jnp.mean(y, axis=0, keepdims=True)                    # (1,N,F)
    var = jnp.mean((y - mean) ** 2, axis=0, keepdims=True)       # biased variance
    return (y - mean) * jax.lax.rsqrt(var + EPS) * gamma[None] + beta[None]


def gc_block_kernel(x_ref, adj_ref, w_ref, aff_ref, out_ref):
    # adj_ref: (3,N,N) = [mask, att1, att2]
    # w_ref:   (2,F,F) = [w1, w2]
    # aff_ref: (2,3,N,F) = per layer [bias (broadcast), gamma, beta]
    x = x_ref[...]
    msk = adj_ref[0]
    adj1 = adj_ref[1] * msk          # att1 * mask
    adj2 = adj_ref[2] * msk          # att2 * mask

    # gc1 -> bn1 -> relu -> dropout(identity)
    y = _graph_conv(x, w_ref[0], adj1, aff_ref[0, 0])
    y = _batchnorm_train(y, aff_ref[0, 1], aff_ref[0, 2])
    y = jnp.maximum(y, 0.0)
    # TODO(synk): training-mode stochastic dropout not reproduced (identity here).

    # gc2 on residual input -> bn2 -> relu -> (+ gc2 out) -> (+ x)
    y = _graph_conv(y + x, w_ref[1], adj2, aff_ref[1, 0])
    y2 = y
    y = _batchnorm_train(y, aff_ref[1, 1], aff_ref[1, 2])
    y = jnp.maximum(y, 0.0)
    y = y + y2

    out_ref[...] = (y + x).astype(out_ref.dtype)


def gc_block(x, mask, params):
    B, N, F = x.shape

    # Pack the 12 small parameter tensors + mask into 3 VMEM inputs (one-time
    # wrapper-side packing; cuts per-call DMA descriptor / semaphore overhead).
    adj_pack = jnp.stack([mask, params['att1'], params['att2']])            # (3,N,N)
    w_pack = jnp.stack([params['w1'], params['w2']])                        # (2,F,F)

    def _aff(l):
        b = jnp.broadcast_to(params[f'b{l}'], (N, F))
        return jnp.stack([b, params[f'g{l}'], params[f'be{l}']])            # (3,N,F)

    aff_pack = jnp.stack([_aff(1), _aff(2)])                                # (2,3,N,F)

    args = (x, adj_pack, w_pack, aff_pack)

    # Advisory cost model: 2 graph convs, each ~ (x@W) + gram + adj@support.
    flops = 2 * (2 * B * N * F * F + 4 * B * N * N * F) + 16 * B * N * F
    transcendentals = 2 * B * N + 2 * N * F          # cosine rsqrt + BN rsqrt
    bytes_accessed = sum(int(a.size) * 4 for a in args) + B * N * F * 4

    vmem_specs = [pl.BlockSpec(memory_space=pltpu.MemorySpace.VMEM) for _ in args]
    return pl.pallas_call(
        gc_block_kernel,
        out_shape=jax.ShapeDtypeStruct((B, N, F), jnp.float32),
        in_specs=vmem_specs,
        out_specs=pl.BlockSpec(memory_space=pltpu.MemorySpace.VMEM),
        cost_estimate=pl.CostEstimate(
            flops=flops,
            transcendentals=transcendentals,
            bytes_accessed=bytes_accessed),
    )(*args)


if __name__ == "__main__":
    B, N, F = 2, 10, 32          # batch, node_n, in_features
    key = jax.random.PRNGKey(0)
    keys = jax.random.split(key, 9)

    # Mirror GraphConvolution.reset_parameters(): uniform(-stdv, stdv), stdv = 1/sqrt(out)
    stdv = 1.0 / math.sqrt(F)

    def u(k, shape):
        return jax.random.uniform(k, shape, jnp.float32, -stdv, stdv)

    params = dict(
        w1=u(keys[0], (F, F)), att1=u(keys[1], (N, N)), b1=u(keys[2], (1, F)),
        g1=jnp.ones((N, F), jnp.float32), be1=jnp.zeros((N, F), jnp.float32),
        w2=u(keys[3], (F, F)), att2=u(keys[4], (N, N)), b2=u(keys[5], (1, F)),
        g2=jnp.ones((N, F), jnp.float32), be2=jnp.zeros((N, F), jnp.float32),
    )

    x = jax.random.normal(keys[6], (B, N, F), jnp.float32)
    mask = (jax.random.uniform(keys[7], (N, N)) > 0.3).astype(jnp.float32)

    out = gc_block(x, mask, params)
    jax.block_until_ready(out)
    assert out.shape == (B, N, F) and jnp.all(jnp.isfinite(out))
    print("KERNEL_OK")
</pallas_src>

<mosaic_0001>
module attributes {stable_mosaic.version = 11 : i64} {
  func.func @gc_block_kernel(%arg0: memref<2x10x32xf32, #tpu.memory_space<vmem>>, %arg1: memref<3x10x10xf32, #tpu.memory_space<vmem>>, %arg2: memref<2x32x32xf32, #tpu.memory_space<vmem>>, %arg3: memref<2x3x10x32xf32, #tpu.memory_space<vmem>>, %arg4: memref<2x10x32xf32, #tpu.memory_space<vmem>>) attributes {dimension_semantics = [], scalar_prefetch = 0 : i64, scratch_operands = 0 : i64, tpu.core_type = #tpu.core_type<tc>} {
    %c0 = arith.constant 0 : index
    %c0_0 = arith.constant 0 : index
    %c0_1 = arith.constant 0 : index
    %0 = vector.load %arg0[%c0, %c0_0, %c0_1] : memref<2x10x32xf32, #tpu.memory_space<vmem>>, vector<2x10x32xf32>
    %c0_2 = arith.constant 0 : index
    %c0_3 = arith.constant 0 : index
    %c0_4 = arith.constant 0 : index
    %1 = vector.load %arg1[%c0_2, %c0_3, %c0_4] : memref<3x10x10xf32, #tpu.memory_space<vmem>>, vector<1x10x10xf32>
    %2 = vector.shape_cast %1 : vector<1x10x10xf32> to vector<10x10xf32>
    %c1 = arith.constant 1 : index
    %c0_5 = arith.constant 0 : index
    %c0_6 = arith.constant 0 : index
    %3 = vector.load %arg1[%c1, %c0_5, %c0_6] : memref<3x10x10xf32, #tpu.memory_space<vmem>>, vector<1x10x10xf32>
    %4 = vector.shape_cast %3 : vector<1x10x10xf32> to vector<10x10xf32>
    %5 = arith.mulf %4, %2 : vector<10x10xf32>
    %c2 = arith.constant 2 : index
    %c0_7 = arith.constant 0 : index
    %c0_8 = arith.constant 0 : index
    %6 = vector.load %arg1[%c2, %c0_7, %c0_8] : memref<3x10x10xf32, #tpu.memory_space<vmem>>, vector<1x10x10xf32>
    %7 = vector.shape_cast %6 : vector<1x10x10xf32> to vector<10x10xf32>
    %8 = arith.mulf %7, %2 : vector<10x10xf32>
    %c0_9 = arith.constant 0 : index
    %c0_10 = arith.constant 0 : index
    %c0_11 = arith.constant 0 : index
    %9 = vector.load %arg2[%c0_9, %c0_10, %c0_11] : memref<2x32x32xf32, #tpu.memory_space<vmem>>, vector<1x32x32xf32>
    %10 = vector.shape_cast %9 : vector<1x32x32xf32> to vector<32x32xf32>
    %c0_12 = arith.constant 0 : index
    %c0_13 = arith.constant 0 : index
    %c0_14 = arith.constant 0 : index
    %c0_15 = arith.constant 0 : index
    %11 = vector.load %arg3[%c0_12, %c0_13, %c0_14, %c0_15] : memref<2x3x10x32xf32, #tpu.memory_space<vmem>>, vector<1x1x10x32xf32>
    %12 = vector.shape_cast %11 : vector<1x1x10x32xf32> to vector<10x32xf32>
    "tpu.trace_start"() <{level = 10 : i32, message = "bnf,fg->bng"}> : () -> ()
    %cst = arith.constant dense<0.000000e+00> : vector<2x10x32xf32>
    %13 = tpu.matmul %0, %10, %cst {dimension_numbers = #tpu.dot_dimension_numbers<[2], [0], [0, 1], [1], [0, 0, 0, 1, 1, 1], [], []>} : vector<2x10x32xf32>, vector<32x32xf32>, vector<2x10x32xf32> -> vector<2x10x32xf32>
    "tpu.trace_stop"() : () -> ()
    "tpu.trace_start"() <{level = 10 : i32, message = "bnf,bmf->bnm"}> : () -> ()
    %cst_16 = arith.constant dense<0.000000e+00> : vector<2x10x10xf32>
    %14 = tpu.matmul %0, %0, %cst_16 {dimension_numbers = #tpu.dot_dimension_numbers<[2], [2], [1], [1], [0, 0, 0, 1, 1, 1], [0], [0]>} : vector<2x10x32xf32>, vector<2x10x32xf32>, vector<2x10x10xf32> -> vector<2x10x10xf32>
    "tpu.trace_stop"() : () -> ()
    %15 = arith.mulf %0, %0 : vector<2x10x32xf32>
    %cst_17 = arith.constant dense<0.000000e+00> : vector<2x10xf32>
    %16 = vector.multi_reduction <add>, %15, %cst_17 [2] : vector<2x10x32xf32> to vector<2x10xf32>
    %17 = math.rsqrt %16 : vector<2x10xf32>
    %18 = vector.shape_cast %17 : vector<2x10xf32> to vector<2x10x1xf32>
    %19 = vector.shape_cast %17 : vector<2x10xf32> to vector<2x1x10xf32>
    %20 = vector.broadcast %18 : vector<2x10x1xf32> to vector<2x10x10xf32>
    %21 = vector.broadcast %19 : vector<2x1x10xf32> to vector<2x10x10xf32>
    %22 = arith.mulf %20, %21 : vector<2x10x10xf32>
    %23 = arith.mulf %14, %22 : vector<2x10x10xf32>
    %24 = vector.shape_cast %5 : vector<10x10xf32> to vector<1x10x10xf32>
    %25 = vector.broadcast %24 : vector<1x10x10xf32> to vector<2x10x10xf32>
    %26 = arith.mulf %25, %23 : vector<2x10x10xf32>
    "tpu.trace_start"() <{level = 10 : i32, message = "bnm,bmg->bng"}> : () -> ()
    %cst_18 = arith.constant dense<0.000000e+00> : vector<2x10x32xf32>
    %27 = tpu.matmul %26, %13, %cst_18 {dimension_numbers = #tpu.dot_dimension_numbers<[2], [1], [1], [2], [0, 0, 0, 1, 1, 2], [0], [0]>} : vector<2x10x10xf32>, vector<2x10x32xf32>, vector<2x10x32xf32> -> vector<2x10x32xf32>
    "tpu.trace_stop"() : () -> ()
    %28 = vector.shape_cast %12 : vector<10x32xf32> to vector<1x10x32xf32>
    %29 = vector.broadcast %28 : vector<1x10x32xf32> to vector<2x10x32xf32>
    %30 = arith.addf %27, %29 : vector<2x10x32xf32>
    %c0_19 = arith.constant 0 : index
    %c1_20 = arith.constant 1 : index
    %c0_21 = arith.constant 0 : index
    %c0_22 = arith.constant 0 : index
    %31 = vector.load %arg3[%c0_19, %c1_20, %c0_21, %c0_22] : memref<2x3x10x32xf32, #tpu.memory_space<vmem>>, vector<1x1x10x32xf32>
    %32 = vector.shape_cast %31 : vector<1x1x10x32xf32> to vector<10x32xf32>
    %c0_23 = arith.constant 0 : index
    %c2_24 = arith.constant 2 : index
    %c0_25 = arith.constant 0 : index
    %c0_26 = arith.constant 0 : index
    %33 = vector.load %arg3[%c0_23, %c2_24, %c0_25, %c0_26] : memref<2x3x10x32xf32, #tpu.memory_space<vmem>>, vector<1x1x10x32xf32>
    %34 = vector.shape_cast %33 : vector<1x1x10x32xf32> to vector<10x32xf32>
    %cst_27 = arith.constant dense<0.000000e+00> : vector<10x32xf32>
    %35 = vector.multi_reduction <add>, %30, %cst_27 [0] : vector<2x10x32xf32> to vector<10x32xf32>
    %36 = vector.shape_cast %35 : vector<10x32xf32> to vector<1x10x32xf32>
    %cst_28 = arith.constant 2.000000e+00 : f32
    %37 = vector.broadcast %cst_28 : f32 to vector<1x10x32xf32>
    %38 = arith.divf %36, %37 : vector<1x10x32xf32>
    %39 = vector.broadcast %38 : vector<1x10x32xf32> to vector<2x10x32xf32>
    %40 = arith.subf %30, %39 : vector<2x10x32xf32>
    %41 = arith.mulf %40, %40 : vector<2x10x32xf32>
    %cst_29 = arith.constant dense<0.000000e+00> : vector<10x32xf32>
    %42 = vector.multi_reduction <add>, %41, %cst_29 [0] : vector<2x10x32xf32> to vector<10x32xf32>
    %43 = vector.shape_cast %42 : vector<10x32xf32> to vector<1x10x32xf32>
    %cst_30 = arith.constant 2.000000e+00 : f32
    %44 = vector.broadcast %cst_30 : f32 to vector<1x10x32xf32>
    %45 = arith.divf %43, %44 : vector<1x10x32xf32>
    %46 = vector.broadcast %38 : vector<1x10x32xf32> to vector<2x10x32xf32>
    %47 = arith.subf %30, %46 : vector<2x10x32xf32>
    %cst_31 = arith.constant 9.99999974E-6 : f32
    %48 = vector.broadcast %cst_31 : f32 to vector<1x10x32xf32>
    %49 = arith.addf %45, %48 : vector<1x10x32xf32>
    %50 = math.rsqrt %49 : vector<1x10x32xf32>
    %51 = vector.broadcast %50 : vector<1x10x32xf32> to vector<2x10x32xf32>
    %52 = arith.mulf %47, %51 : vector<2x10x32xf32>
    %53 = vector.shape_cast %32 : vector<10x32xf32> to vector<1x10x32xf32>
    %54 = vector.broadcast %53 : vector<1x10x32xf32> to vector<2x10x32xf32>
    %55 = arith.mulf %52, %54 : vector<2x10x32xf32>
    %56 = vector.shape_cast %34 : vector<10x32xf32> to vector<1x10x32xf32>
    %57 = vector.broadcast %56 : vector<1x10x32xf32> to vector<2x10x32xf32>
    %58 = arith.addf %55, %57 : vector<2x10x32xf32>
    %cst_32 = arith.constant 0.000000e+00 : f32
    %59 = vector.broadcast %cst_32 : f32 to vector<2x10x32xf32>
    %60 = arith.maximumf %58, %59 : vector<2x10x32xf32>
    %61 = arith.addf %60, %0 : vector<2x10x32xf32>
    %c1_33 = arith.constant 1 : index
    %c0_34 = arith.constant 0 : index
    %c0_35 = arith.constant 0 : index
    %62 = vector.load %arg2[%c1_33, %c0_34, %c0_35] : memref<2x32x32xf32, #tpu.memory_space<vmem>>, vector<1x32x32xf32>
    %63 = vector.shape_cast %62 : vector<1x32x32xf32> to vector<32x32xf32>
    %c1_36 = arith.constant 1 : index
    %c0_37 = arith.constant 0 : index
    %c0_38 = arith.constant 0 : index
    %c0_39 = arith.constant 0 : index
    %64 = vector.load %arg3[%c1_36, %c0_37, %c0_38, %c0_39] : memref<2x3x10x32xf32, #tpu.memory_space<vmem>>, vector<1x1x10x32xf32>
    %65 = vector.shape_cast %64 : vector<1x1x10x32xf32> to vector<10x32xf32>
    "tpu.trace_start"() <{level = 10 : i32, message = "bnf,fg->bng"}> : () -> ()
    %cst_40 = arith.constant dense<0.000000e+00> : vector<2x10x32xf32>
    %66 = tpu.matmul %61, %63, %cst_40 {dimension_numbers = #tpu.dot_dimension_numbers<[2], [0], [0, 1], [1], [0, 0, 0, 1, 1, 1], [], []>} : vector<2x10x32xf32>, vector<32x32xf32>, vector<2x10x32xf32> -> vector<2x10x32xf32>
    "tpu.trace_stop"() : () -> ()
    "tpu.trace_start"() <{level = 10 : i32, message = "bnf,bmf->bnm"}> : () -> ()
    %cst_41 = arith.constant dense<0.000000e+00> : vector<2x10x10xf32>
    %67 = tpu.matmul %61, %61, %cst_41 {dimension_numbers = #tpu.dot_dimension_numbers<[2], [2], [1], [1], [0, 0, 0, 1, 1, 1], [0], [0]>} : vector<2x10x32xf32>, vector<2x10x32xf32>, vector<2x10x10xf32> -> vector<2x10x10xf32>
    "tpu.trace_stop"() : () -> ()
    %68 = arith.mulf %61, %61 : vector<2x10x32xf32>
    %cst_42 = arith.constant dense<0.000000e+00> : vector<2x10xf32>
    %69 = vector.multi_reduction <add>, %68, %cst_42 [2] : vector<2x10x32xf32> to vector<2x10xf32>
    %70 = math.rsqrt %69 : vector<2x10xf32>
    %71 = vector.shape_cast %70 : vector<2x10xf32> to vector<2x10x1xf32>
    %72 = vector.shape_cast %70 : vector<2x10xf32> to vector<2x1x10xf32>
    %73 = vector.broadcast %71 : vector<2x10x1xf32> to vector<2x10x10xf32>
    %74 = vector.broadcast %72 : vector<2x1x10xf32> to vector<2x10x10xf32>
    %75 = arith.mulf %73, %74 : vector<2x10x10xf32>
    %76 = arith.mulf %67, %75 : vector<2x10x10xf32>
    %77 = vector.shape_cast %8 : vector<10x10xf32> to vector<1x10x10xf32>
    %78 = vector.broadcast %77 : vector<1x10x10xf32> to vector<2x10x10xf32>
    %79 = arith.mulf %78, %76 : vector<2x10x10xf32>
    "tpu.trace_start"() <{level = 10 : i32, message = "bnm,bmg->bng"}> : () -> ()
    %cst_43 = arith.constant dense<0.000000e+00> : vector<2x10x32xf32>
    %80 = tpu.matmul %79, %66, %cst_43 {dimension_numbers = #tpu.dot_dimension_numbers<[2], [1], [1], [2], [0, 0, 0, 1, 1, 2], [0], [0]>} : vector<2x10x10xf32>, vector<2x10x32xf32>, vector<2x10x32xf32> -> vector<2x10x32xf32>
    "tpu.trace_stop"() : () -> ()
    %81 = vector.shape_cast %65 : vector<10x32xf32> to vector<1x10x32xf32>
    %82 = vector.broadcast %81 : vector<1x10x32xf32> to vector<2x10x32xf32>
    %83 = arith.addf %80, %82 : vector<2x10x32xf32>
    %c1_44 = arith.constant 1 : index
    %c1_45 = arith.constant 1 : index
    %c0_46 = arith.constant 0 : index
    %c0_47 = arith.constant 0 : index
    %84 = vector.load %arg3[%c1_44, %c1_45, %c0_46, %c0_47] : memref<2x3x10x32xf32, #tpu.memory_space<vmem>>, vector<1x1x10x32xf32>
    %85 = vector.shape_cast %84 : vector<1x1x10x32xf32> to vector<10x32xf32>
    %c1_48 = arith.constant 1 : index
    %c2_49 = arith.constant 2 : index
    %c0_50 = arith.constant 0 : index
    %c0_51 = arith.constant 0 : index
    %86 = vector.load %arg3[%c1_48, %c2_49, %c0_50, %c0_51] : memref<2x3x10x32xf32, #tpu.memory_space<vmem>>, vector<1x1x10x32xf32>
    %87 = vector.shape_cast %86 : vector<1x1x10x32xf32> to vector<10x32xf32>
    %cst_52 = arith.constant dense<0.000000e+00> : vector<10x32xf32>
    %88 = vector.multi_reduction <add>, %83, %cst_52 [0] : vector<2x10x32xf32> to vector<10x32xf32>
    %89 = vector.shape_cast %88 : vector<10x32xf32> to vector<1x10x32xf32>
    %cst_53 = arith.constant 2.000000e+00 : f32
    %90 = vector.broadcast %cst_53 : f32 to vector<1x10x32xf32>
    %91 = arith.divf %89, %90 : vector<1x10x32xf32>
    %92 = vector.broadcast %91 : vector<1x10x32xf32> to vector<2x10x32xf32>
    %93 = arith.subf %83, %92 : vector<2x10x32xf32>
    %94 = arith.mulf %93, %93 : vector<2x10x32xf32>
    %cst_54 = arith.constant dense<0.000000e+00> : vector<10x32xf32>
    %95 = vector.multi_reduction <add>, %94, %cst_54 [0] : vector<2x10x32xf32> to vector<10x32xf32>
    %96 = vector.shape_cast %95 : vector<10x32xf32> to vector<1x10x32xf32>
    %cst_55 = arith.constant 2.000000e+00 : f32
    %97 = vector.broadcast %cst_55 : f32 to vector<1x10x32xf32>
    %98 = arith.divf %96, %97 : vector<1x10x32xf32>
    %99 = vector.broadcast %91 : vector<1x10x32xf32> to vector<2x10x32xf32>
    %100 = arith.subf %83, %99 : vector<2x10x32xf32>
    %cst_56 = arith.constant 9.99999974E-6 : f32
    %101 = vector.broadcast %cst_56 : f32 to vector<1x10x32xf32>
    %102 = arith.addf %98, %101 : vector<1x10x32xf32>
    %103 = math.rsqrt %102 : vector<1x10x32xf32>
    %104 = vector.broadcast %103 : vector<1x10x32xf32> to vector<2x10x32xf32>
    %105 = arith.mulf %100, %104 : vector<2x10x32xf32>
    %106 = vector.shape_cast %85 : vector<10x32xf32> to vector<1x10x32xf32>
    %107 = vector.broadcast %106 : vector<1x10x32xf32> to vector<2x10x32xf32>
    %108 = arith.mulf %105, %107 : vector<2x10x32xf32>
    %109 = vector.shape_cast %87 : vector<10x32xf32> to vector<1x10x32xf32>
    %110 = vector.broadcast %109 : vector<1x10x32xf32> to vector<2x10x32xf32>
    %111 = arith.addf %108, %110 : vector<2x10x32xf32>
    %cst_57 = arith.constant 0.000000e+00 : f32
    %112 = vector.broadcast %cst_57 : f32 to vector<2x10x32xf32>
    %113 = arith.maximumf %111, %112 : vector<2x10x32xf32>
    %114 = arith.addf %113, %83 : vector<2x10x32xf32>
    %115 = arith.addf %114, %0 : vector<2x10x32xf32>
    %c0_58 = arith.constant 0 : index
    %c0_59 = arith.constant 0 : index
    %c0_60 = arith.constant 0 : index
    %116 = vector.load %arg4[%c0_58, %c0_59, %c0_60] : memref<2x10x32xf32, #tpu.memory_space<vmem>>, vector<2x10x32xf32>
    tpu.vector_store %arg4[%c0_58, %c0_59, %c0_60], %115 {strides = array<i32>} : memref<2x10x32xf32, #tpu.memory_space<vmem>>, vector<2x10x32xf32>,
    return
  }
}

</mosaic_0001>

<llo_original>
// kernel: tpu_custom_call.1
$region0: #{tpu_custom_call.1}
  #allocation0 [shape = 'u32[]', space=smem, size = 0x4, offset = 0x4, fixed_abs, tag = 'smem constant byte address 0x4 - core index']
  #allocation1 [shape = 'u32[144,128]{1,0:T(1,128)}', space=vmem, size = 0x12000, scoped, tag = 'internal scratch']
  %s0 = inlined_call_operand.vmem [shape: f32[2,10,32], index: 0, kind: input, shape index: {}]
  %s1 = inlined_call_operand.vmem [shape: f32[3,10,10], index: 1, kind: input, shape index: {}]
  %s2 = inlined_call_operand.vmem [shape: f32[2,32,32], index: 2, kind: input, shape index: {}]
  %s3 = inlined_call_operand.vmem [shape: f32[2,3,10,32], index: 3, kind: input, shape index: {}]
  %s4 = inlined_call_operand.vmem [shape: f32[2,10,32], index: 4, kind: output, shape index: {}]
  %s5 = sld [smem:[#allocation0]]
  $region26: #{tpu_custom_call.1} parent=0
    _
  %s7 = ssub.s32 1, %s5
  %s8 = scalar_select 0, %s7, %s5
  // Predicated region
  $region2: #{tpu_custom_call.1} parent=0 // pred_check
    _
  $region3: #{tpu_custom_call.1} parent=0 // pred_check_branch
    %10 = sbr.rel (0) target = $region5
  $region4: #{tpu_custom_call.1} parent=0 // pred_region
    _
  $region5: #{tpu_custom_call.1} parent=0 // pred_fallthru
    _
  // Predicated region
  $region6: #{tpu_custom_call.1} parent=0 // pred_check
    _
  $region7: #{tpu_custom_call.1} parent=0 // pred_check_branch
    %12 = sbr.rel (0) target = $region9
  $region8: #{tpu_custom_call.1} parent=0 // pred_region
    _
  $region9: #{tpu_custom_call.1} parent=0 // pred_fallthru
    _
  // Predicated region
  $region10: #{tpu_custom_call.1} parent=0 // pred_check
    _
  $region11: #{tpu_custom_call.1} parent=0 // pred_check_branch
    %14 = sbr.rel (0) target = $region13
  $region12: #{tpu_custom_call.1} parent=0 // pred_region
    _
  $region13: #{tpu_custom_call.1} parent=0 // pred_fallthru
    _
  // Predicated region
  $region14: #{tpu_custom_call.1} parent=0 // pred_check
    _
  $region15: #{tpu_custom_call.1} parent=0 // pred_check_branch
    %16 = sbr.rel (0) target = $region17
  $region16: #{tpu_custom_call.1} parent=0 // pred_region
    _
  $region17: #{tpu_custom_call.1} parent=0 // pred_fallthru
    _
  %v17 = vld [vmem:[%s0] sm:$0xff]
  %v18 = vld [vmem:[%s0 + $0x8] sm:$0x3]
  %v19 = vld [vmem:[%s0 + $0x10] sm:$0xff]
  %v20 = vld [vmem:[%s0 + $0x18] sm:$0x3]
  %v21 = vld [vmem:[%s1] sm:$0xff]
  %v22 = vld [vmem:[%s1 + $0x8] sm:$0x3]
  %s23 = scalar_lea.vmem %s1, 16
  %v24 = vld [vmem:[%s23] sm:$0xff]
  %v25 = vld [vmem:[%s23 + $0x8] sm:$0x3]
  %v26 = vmul.f32 %v24, %v21
  %v27 = vmul.f32 %v25, %v22
  %s28 = scalar_lea.vmem %s1, 32
  %v29 = vld [vmem:[%s28] sm:$0xff]
  %v30 = vld [vmem:[%s28 + $0x8] sm:$0x3]
  %v31 = vmul.f32 %v29, %v21
  %v32 = vmul.f32 %v30, %v22
  %v33 = vld [vmem:[%s2] sm:$0xff]
  %v34 = vld [vmem:[%s2 + $0x8] sm:$0xff]
  %v35 = vld [vmem:[%s2 + $0x10] sm:$0xff]
  %v36 = vld [vmem:[%s2 + $0x18] sm:$0xff]
  %v37 = vld [vmem:[%s3] sm:$0xff]
  %v38 = vld [vmem:[%s3 + $0x8] sm:$0x3]
  %v43 = vcombine.high %v17, %v17
  %v45 = vunpack.c.l.s4 1983009808
  %v46 = vunpack.c.0.s8 %v45
  %v47 = vlaneseq
  %v48 = vshrl.u32 %v47, 7
  %v49 = vsub.s32 %v46, %v48
  %v50 = vrot.slane %v17, %v49
  %v52 = vunpack.c.l.s4 1983009808
  %v53 = vunpack.c.0.s8 %v52
  %v54 = vlaneseq
  %v55 = vshrl.u32 %v54, 7
  %v56 = vsub.s32 %v53, %v55
  %v57 = vrot.slane %v43, %v56
  %v58 = vcombine.high %v50, %v50
  %v59 = vcombine.high %v57, %v57
  %v61 = vunpack.c.l.s4 1983009808
  %v62 = vunpack.c.0.s8 %v61
  %v63 = vlaneseq
  %v64 = vshrl.u32 %v63, 7
  %v65 = vsub.s32 %v62, %v64
  %v66 = vrot.slane %v18, %v65
  %v67 = vcombine.high %v19, %v19
  %v69 = vunpack.c.l.s4 1983009808
  %v70 = vunpack.c.0.s8 %v69
  %v71 = vlaneseq
  %v72 = vshrl.u32 %v71, 7
  %v73 = vsub.s32 %v70, %v72
  %v74 = vrot.slane %v19, %v73
  %v76 = vunpack.c.l.s4 1983009808
  %v77 = vunpack.c.0.s8 %v76
  %v78 = vlaneseq
  %v79 = vshrl.u32 %v78, 7
  %v80 = vsub.s32 %v77, %v79
  %v81 = vrot.slane %v67, %v80
  %v82 = vcombine.high %v74, %v74
  %v83 = vcombine.high %v81, %v81
  %v85 = vunpack.c.l.s4 1983009808
  %v86 = vunpack.c.0.s8 %v85
  %v87 = vlaneseq
  %v88 = vshrl.u32 %v87, 7
  %v89 = vsub.s32 %v86, %v88
  %v90 = vrot.slane %v20, %v89
  %v91 = vcombine.low %v50, %v58
  %v92 = vcombine.low %v57, %v59
  %v94 = vunpack.c.l.s4 1983009808
  %v95 = vunpack.c.0.s8 %v94
  %v96 = vlaneseq
  %v97 = vshrl.u32 %v96, 7
  %v98 = vsub.s32 %v95, %v97
  %v99 = vrot.slane %v91, %v98
  %v101 = vunpack.c.l.s4 1983009808
  %v102 = vunpack.c.0.s8 %v101
  %v103 = vlaneseq
  %v104 = vshrl.u32 %v103, 7
  %v105 = vsub.s32 %v102, %v104
  %v106 = vrot.slane %v92, %v105
  %v107 = vcombine.low %v99, %v106
  %v108 = vcombine.low %v66, %v74
  %v109 = vcombine.low %v82, %v81
  %v111 = vunpack.c.l.s4 1983009808
  %v112 = vunpack.c.0.s8 %v111
  %v113 = vlaneseq
  %v114 = vshrl.u32 %v113, 7
  %v115 = vsub.s32 %v112, %v114
  %v116 = vrot.slane %v108, %v115
  %v118 = vunpack.c.l.s4 1983009808
  %v119 = vunpack.c.0.s8 %v118
  %v120 = vlaneseq
  %v121 = vshrl.u32 %v120, 7
  %v122 = vsub.s32 %v119, %v121
  %v123 = vrot.slane %v109, %v122
  %v124 = vcombine.low %v116, %v123
  %v125 = vcombine.low %v83, %v90
  %v127 = vunpack.c.l.s4 1983009808
  %v128 = vunpack.c.0.s8 %v127
  %v129 = vlaneseq
  %v130 = vshrl.u32 %v129, 7
  %v131 = vsub.s32 %v128, %v130
  %v132 = vrot.slane %v125, %v131
  %vm133 = vcmask 261120
  %v134 = vsel %vm133, %v107, 0
  %v136 = vsel %vm133, %v124, 0
  %v138 = vsel %vm133, %v132, 0
  %140 = vmatprep.subr.mxu0 0.0
  %141 = vmatpush1.msra.mxu0 %v33
  %142 = vmatprep.subr.mxu0 0.0
  %143 = vmatpush1.msra.mxu0 %v34
  %144 = vmatprep.subr.mxu0 0.0
  %145 = vmatpush1.msra.mxu0 %v35
  %146 = vmatprep.subr.mxu0 0.0
  %147 = vmatpush1.msra.mxu0 %v36
  %148 = vmatprep.subr.mxu0 0.0
  %149 = vmatpush1.msra.mxu0 0.0
  %150 = vmatprep.subr.mxu0 0.0
  %151 = vmatpush1.msra.mxu0 0.0
  %152 = vmatprep.subr.mxu0 0.0
  %153 = vmatpush1.msra.mxu0 0.0
  %154 = vmatprep.subr.mxu0 0.0
  %155 = vmatpush1.msra.mxu0 0.0
  %156 = vmatprep.subr.mxu0 0.0
  %157 = vmatpush1.msra.mxu0 0.0
  %158 = vmatprep.subr.mxu0 0.0
  %159 = vmatpush1.msra.mxu0 0.0
  %160 = vmatprep.subr.mxu0 0.0
  %161 = vmatpush1.msra.mxu0 0.0
  %162 = vmatprep.subr.mxu0 0.0
  %163 = vmatpush1.msra.mxu0 0.0
  %164 = vmatprep.subr.mxu0 0.0
  %165 = vmatpush1.msra.mxu0 0.0
  %166 = vmatprep.subr.mxu0 0.0
  %167 = vmatpush1.msra.mxu0 0.0
  %168 = vmatprep.subr.mxu0 0.0
  %169 = vmatpush1.msra.mxu0 0.0
  %170 = vmatprep.subr.mxu0 0.0
  %171 = vmatpush1.msra.mxu0 0.0
  %172 = vmatprep.subr.mxu0 0.0
  %173 = vmatpush1.msra.mxu0 0.0
  %174 = vmatprep.subr.mxu0 0.0
  %175 = vmatpush1.msra.mxu0 0.0
  %176 = vmatprep.subr.mxu0 0.0
  %177 = vmatpush1.msra.mxu0 0.0
  %178 = vmatprep.subr.mxu0 0.0
  %179 = vmatpush1.msra.mxu0 0.0
  %180 = vmatprep.subr.mxu0 0.0
  %181 = vmatpush1.msra.mxu0 0.0
  %182 = vmatprep.subr.mxu0 0.0
  %183 = vmatpush1.msra.mxu0 0.0
  %184 = vmatprep.subr.mxu0 0.0
  %185 = vmatpush1.msra.mxu0 0.0
  %186 = vmatprep.subr.mxu0 0.0
  %187 = vmatpush1.msra.mxu0 0.0
  %188 = vmatprep.subr.mxu0 0.0
  %189 = vmatpush1.msra.mxu0 0.0
  %190 = vmatprep.subr.mxu0 0.0
  %191 = vmatpush1.msra.mxu0 0.0
  %192 = vmatprep.subr.mxu0 0.0
  %193 = vmatpush1.msra.mxu0 0.0
  %194 = vmatprep.subr.mxu0 0.0
  %195 = vmatpush1.msra.mxu0 0.0
  %196 = vmatprep.subr.mxu0 0.0
  %197 = vmatpush1.msra.mxu0 0.0
  %198 = vmatprep.subr.mxu0 0.0
  %199 = vmatpush1.msra.mxu0 0.0
  %200 = vmatprep.subr.mxu0 0.0
  %201 = vmatpush1.msra.mxu0 0.0
  %202 = vmatprep.subr.mxu0 0.0
  %203 = vmatpush1.msra.mxu0 0.0
  %204 = vmatprep.mubr.f32.mxu0 0.0
  %205 = vmatmul.mubr.f32.gmra.mrb[0].mxu0 %v134
  %v206 = vpop.f32.mrb[0].mxu0
  %v207 = vadd.f32 0.0, %v206
  %v208 = vpop.f32.mrb[0].mxu0
  %209 = vmatprep.mubr.f32.mxu0 0.0
  %210 = vmatmul.mubr.f32.gmra.mrb[0].mxu0 %v136
  %v211 = vpop.f32.mrb[0].mxu0
  %v212 = vadd.f32 0.0, %v211
  %v213 = vpop.f32.mrb[0].mxu0
  %214 = vmatprep.mubr.f32.mxu0 0.0
  %215 = vmatmul.mubr.f32.gmra.mrb[0].mxu0 %v138
  %v216 = vpop.f32.mrb[0].mxu0
  %v217 = vadd.f32 0.0, %v216
  %v218 = vpop.f32.mrb[0].mxu0
  %219 = vdwg.mxu0
  %v223 = vcombine.high %v207, %v207
  %v225 = vunpack.c.l.s4 1983009808
  %v226 = vunpack.c.0.s8 %v225
  %v227 = vlaneseq
  %v228 = vshrl.u32 %v227, 7
  %v229 = vsub.s32 %v226, %v228
  %v230 = vrot.slane %v207, %v229
  %v232 = vunpack.c.l.s4 1983009808
  %v233 = vunpack.c.0.s8 %v232
  %v234 = vlaneseq
  %v235 = vshrl.u32 %v234, 7
  %v236 = vsub.s32 %v233, %v235
  %v237 = vrot.slane %v223, %v236
  %v238 = vcombine.high %v230, %v230
  %v239 = vcombine.high %v237, %v237
  %v240 = vcombine.high %v212, %v212
  %v242 = vunpack.c.l.s4 1983009808
  %v243 = vunpack.c.0.s8 %v242
  %v244 = vlaneseq
  %v245 = vshrl.u32 %v244, 7
  %v246 = vsub.s32 %v243, %v245
  %v247 = vrot.slane %v212, %v246
  %v249 = vunpack.c.l.s4 1983009808
  %v250 = vunpack.c.0.s8 %v249
  %v251 = vlaneseq
  %v252 = vshrl.u32 %v251, 7
  %v253 = vsub.s32 %v250, %v252
  %v254 = vrot.slane %v240, %v253
  %v255 = vcombine.high %v247, %v247
  %v256 = vcombine.high %v254, %v254
  %v258 = vunpack.c.l.s4 1983009808
  %v259 = vunpack.c.0.s8 %v258
  %v260 = vlaneseq
  %v261 = vshrl.u32 %v260, 7
  %v262 = vsub.s32 %v259, %v261
  %v263 = vrot.slane %v217, %v262
  %v264 = vcombine.high %v263, %v263
  %v265 = vsel %vm133, %v17, 0
  %v267 = vsel %vm133, %v18, 0
  %269 = vmatprep.subr.mxu0 0.0
  %270 = vmatpush1.xpose.msra.mxu0 %v265
  %271 = vmatprep.subr.mxu0 0.0
  %272 = vmatpush1.xpose.msra.mxu0 %v267
  %273 = vmatprep.subr.mxu0 0.0
  %274 = vmatpush1.xpose.msra.mxu0 0.0
  %275 = vmatprep.subr.mxu0 0.0
  %276 = vmatpush1.xpose.msra.mxu0 0.0
  %277 = vmatprep.subr.mxu0 0.0
  %278 = vmatpush1.xpose.msra.mxu0 0.0
  %279 = vmatprep.subr.mxu0 0.0
  %280 = vmatpush1.xpose.msra.mxu0 0.0
  %281 = vmatprep.subr.mxu0 0.0
  %282 = vmatpush1.xpose.msra.mxu0 0.0
  %283 = vmatprep.subr.mxu0 0.0
  %284 = vmatpush1.xpose.msra.mxu0 0.0
  %285 = vmatprep.subr.mxu0 0.0
  %286 = vmatpush1.xpose.msra.mxu0 0.0
  %287 = vmatprep.subr.mxu0 0.0
  %288 = vmatpush1.xpose.msra.mxu0 0.0
  %289 = vmatprep.subr.mxu0 0.0
  %290 = vmatpush1.xpose.msra.mxu0 0.0
  %291 = vmatprep.subr.mxu0 0.0
  %292 = vmatpush1.xpose.msra.mxu0 0.0
  %293 = vmatprep.subr.mxu0 0.0
  %294 = vmatpush1.xpose.msra.mxu0 0.0
  %295 = vmatprep.subr.mxu0 0.0
  %296 = vmatpush1.xpose.msra.mxu0 0.0
  %297 = vmatprep.subr.mxu0 0.0
  %298 = vmatpush1.xpose.msra.mxu0 0.0
  %299 = vmatprep.subr.mxu0 0.0
  %300 = vmatpush1.xpose.msra.mxu0 0.0
  %301 = vmatprep.subr.mxu0 0.0
  %302 = vmatpush1.xpose.msra.mxu0 0.0
  %303 = vmatprep.subr.mxu0 0.0
  %304 = vmatpush1.xpose.msra.mxu0 0.0
  %305 = vmatprep.subr.mxu0 0.0
  %306 = vmatpush1.xpose.msra.mxu0 0.0
  %307 = vmatprep.subr.mxu0 0.0
  %308 = vmatpush1.xpose.msra.mxu0 0.0
  %309 = vmatprep.subr.mxu0 0.0
  %310 = vmatpush1.xpose.msra.mxu0 0.0
  %311 = vmatprep.subr.mxu0 0.0
  %312 = vmatpush1.xpose.msra.mxu0 0.0
  %313 = vmatprep.subr.mxu0 0.0
  %314 = vmatpush1.xpose.msra.mxu0 0.0
  %315 = vmatprep.subr.mxu0 0.0
  %316 = vmatpush1.xpose.msra.mxu0 0.0
  %317 = vmatprep.subr.mxu0 0.0
  %318 = vmatpush1.xpose.msra.mxu0 0.0
  %319 = vmatprep.subr.mxu0 0.0
  %320 = vmatpush1.xpose.msra.mxu0 0.0
  %321 = vmatprep.subr.mxu0 0.0
  %322 = vmatpush1.xpose.msra.mxu0 0.0
  %323 = vmatprep.subr.mxu0 0.0
  %324 = vmatpush1.xpose.msra.mxu0 0.0
  %325 = vmatprep.subr.mxu0 0.0
  %326 = vmatpush1.xpose.msra.mxu0 0.0
  %327 = vmatprep.subr.mxu0 0.0
  %328 = vmatpush1.xpose.msra.mxu0 0.0
  %329 = vmatprep.subr.mxu0 0.0
  %330 = vmatpush1.xpose.msra.mxu0 0.0
  %331 = vmatprep.subr.mxu0 0.0
  %332 = vmatpush1.xpose.msra.mxu0 0.0
  %333 = vmatprep.mubr.f32.mxu0 0.0
  %334 = vmatmul.mubr.f32.gmra.mrb[0].mxu0 %v265
  %v335 = vpop.f32.mrb[0].mxu0
  %v336 = vadd.f32 0.0, %v335
  %v337 = vpop.f32.mrb[0].mxu0
  %338 = vmatprep.mubr.f32.mxu0 0.0
  %339 = vmatmul.mubr.f32.gmra.mrb[0].mxu0 %v267
  %v340 = vpop.f32.mrb[0].mxu0
  %v341 = vadd.f32 0.0, %v340
  %v342 = vpop.f32.mrb[0].mxu0
  %343 = vdwg.mxu0
  %v344 = vsel %vm133, %v19, 0
  %v346 = vsel %vm133, %v20, 0
  %348 = vmatprep.subr.mxu0 0.0
  %349 = vmatpush1.xpose.msra.mxu0 %v344
  %350 = vmatprep.subr.mxu0 0.0
  %351 = vmatpush1.xpose.msra.mxu0 %v346
  %352 = vmatprep.subr.mxu0 0.0
  %353 = vmatpush1.xpose.msra.mxu0 0.0
  %354 = vmatprep.subr.mxu0 0.0
  %355 = vmatpush1.xpose.msra.mxu0 0.0
  %356 = vmatprep.subr.mxu0 0.0
  %357 = vmatpush1.xpose.msra.mxu0 0.0
  %358 = vmatprep.subr.mxu0 0.0
  %359 = vmatpush1.xpose.msra.mxu0 0.0
  %360 = vmatprep.subr.mxu0 0.0
  %361 = vmatpush1.xpose.msra.mxu0 0.0
  %362 = vmatprep.subr.mxu0 0.0
  %363 = vmatpush1.xpose.msra.mxu0 0.0
  %364 = vmatprep.subr.mxu0 0.0
  %365 = vmatpush1.xpose.msra.mxu0 0.0
  %366 = vmatprep.subr.mxu0 0.0
  %367 = vmatpush1.xpose.msra.mxu0 0.0
  %368 = vmatprep.subr.mxu0 0.0
  %369 = vmatpush1.xpose.msra.mxu0 0.0
  %370 = vmatprep.subr.mxu0 0.0
  %371 = vmatpush1.xpose.msra.mxu0 0.0
  %372 = vmatprep.subr.mxu0 0.0
  %373 = vmatpush1.xpose.msra.mxu0 0.0
  %374 = vmatprep.subr.mxu0 0.0
  %375 = vmatpush1.xpose.msra.mxu0 0.0
  %376 = vmatprep.subr.mxu0 0.0
  %377 = vmatpush1.xpose.msra.mxu0 0.0
  %378 = vmatprep.subr.mxu0 0.0
  %379 = vmatpush1.xpose.msra.mxu0 0.0
  %380 = vmatprep.subr.mxu0 0.0
  %381 = vmatpush1.xpose.msra.mxu0 0.0
  %382 = vmatprep.subr.mxu0 0.0
  %383 = vmatpush1.xpose.msra.mxu0 0.0
  %384 = vmatprep.subr.mxu0 0.0
  %385 = vmatpush1.xpose.msra.mxu0 0.0
  %386 = vmatprep.subr.mxu0 0.0
  %387 = vmatpush1.xpose.msra.mxu0 0.0
  %388 = vmatprep.subr.mxu0 0.0
  %389 = vmatpush1.xpose.msra.mxu0 0.0
  %390 = vmatprep.subr.mxu0 0.0
  %391 = vmatpush1.xpose.msra.mxu0 0.0
  %392 = vmatprep.subr.mxu0 0.0
  %393 = vmatpush1.xpose.msra.mxu0 0.0
  %394 = vmatprep.subr.mxu0 0.0
  %395 = vmatpush1.xpose.msra.mxu0 0.0
  %396 = vmatprep.subr.mxu0 0.0
  %397 = vmatpush1.xpose.msra.mxu0 0.0
  %398 = vmatprep.subr.mxu0 0.0
  %399 = vmatpush1.xpose.msra.mxu0 0.0
  %400 = vmatprep.subr.mxu0 0.0
  %401 = vmatpush1.xpose.msra.mxu0 0.0
  %402 = vmatprep.subr.mxu0 0.0
  %403 = vmatpush1.xpose.msra.mxu0 0.0
  %404 = vmatprep.subr.mxu0 0.0
  %405 = vmatpush1.xpose.msra.mxu0 0.0
  %406 = vmatprep.subr.mxu0 0.0
  %407 = vmatpush1.xpose.msra.mxu0 0.0
  %408 = vmatprep.subr.mxu0 0.0
  %409 = vmatpush1.xpose.msra.mxu0 0.0
  %410 = vmatprep.subr.mxu0 0.0
  %411 = vmatpush1.xpose.msra.mxu0 0.0
  %412 = vmatprep.mubr.f32.mxu0 0.0
  %413 = vmatmul.mubr.f32.gmra.mrb[0].mxu0 %v344
  %v414 = vpop.f32.mrb[0].mxu0
  %v415 = vadd.f32 0.0, %v414
  %v416 = vpop.f32.mrb[0].mxu0
  %417 = vmatprep.mubr.f32.mxu0 0.0
  %418 = vmatmul.mubr.f32.gmra.mrb[0].mxu0 %v346
  %v419 = vpop.f32.mrb[0].mxu0
  %v420 = vadd.f32 0.0, %v419
  %v421 = vpop.f32.mrb[0].mxu0
  %422 = vdwg.mxu0
  %v423 = vmul.f32 %v17, %v17
  %v424 = vmul.f32 %v18, %v18
  %v425 = vmul.f32 %v19, %v19
  %v426 = vmul.f32 %v20, %v20
  %v427 = vsel %vm133, %v423, 0.0
  %428 = vadd.xlane.f32.xlu0 %v427
  %v429 = vpop.xlane.xlu0 %428
  %vm430 = vcmask 254976
  %v431 = vsel %vm430, %v424, 0.0
  %432 = vadd.xlane.f32.xlu0 %v431
  %v433 = vpop.xlane.xlu0 %432
  %v434 = vsel %vm133, %v425, 0.0
  %435 = vadd.xlane.f32.xlu0 %v434
  %v436 = vpop.xlane.xlu0 %435
  %v437 = vsel %vm430, %v426, 0.0
  %438 = vadd.xlane.f32.xlu0 %v437
  %v439 = vpop.xlane.xlu0 %438
  %v440 = vrsqrt.pop %v429
  %v441 = vrsqrt.pop %v433
  %v442 = vrsqrt.pop %v436
  %v443 = vrsqrt.pop %v439
  %v448 = vlaneseq
  %v449 = vand.u32 %v448, 127
  %v450 = vlaneseq
  %v451 = vshrl.u32 %v450, 7
  %v452 = vsub.s32 %v449, %v451
  %v453 = vrot.slane %v440, %v452
  %v454 = vadd.s32 %v449, 4294967288
  %v455 = vlaneseq
  %v456 = vshrl.u32 %v455, 7
  %v457 = vsub.s32 %v454, %v456
  %v458 = vrot.slane %v441, %v457
  %vm459 = vcmask 130112
  %v460 = vsel %vm459, %v458, %v453
  %v461 = vlaneseq
  %v462 = vshrl.u32 %v461, 7
  %v463 = vsub.s32 %v449, %v462
  %v464 = vrot.slane %v442, %v463
  %v465 = vlaneseq
  %v466 = vshrl.u32 %v465, 7
  %v467 = vsub.s32 %v454, %v466
  %v468 = vrot.slane %v443, %v467
  %v469 = vsel %vm459, %v468, %v464
  %vm470 = vcmask 1042434
  %v471 = vsel %vm470, %v460, %v460
  %vm472 = vcmask 1043459
  %v473 = vsel %vm472, %v460, %v471
  %vm474 = vcmask 1044484
  %v475 = vsel %vm474, %v460, %v473
  %vm476 = vcmask 1045509
  %v477 = vsel %vm476, %v460, %v475
  %vm478 = vcmask 1046534
  %v479 = vsel %vm478, %v460, %v477
  %vm480 = vcmask 1047559
  %v481 = vsel %vm480, %v460, %v479
  %v482 = vsel %vm470, %v469, %v469
  %v483 = vsel %vm472, %v469, %v482
  %v484 = vsel %vm474, %v469, %v483
  %v485 = vsel %vm476, %v469, %v484
  %v486 = vsel %vm478, %v469, %v485
  %v487 = vsel %vm480, %v469, %v486
  %v492 = vmul.f32 %v440, %v481
  %v493 = vmul.f32 %v441, %v460
  %v494 = vmul.f32 %v442, %v487
  %v495 = vmul.f32 %v443, %v469
  %v496 = vmul.f32 %v336, %v492
  %v497 = vmul.f32 %v341, %v493
  %v498 = vmul.f32 %v415, %v494
  %v499 = vmul.f32 %v420, %v495
  %v500 = vmul.f32 %v26, %v496
  %v501 = vmul.f32 %v27, %v497
  %v502 = vmul.f32 %v26, %v498
  %v503 = vmul.f32 %v27, %v499
  %v504 = vcombine.low %v230, %v238
  %v505 = vcombine.low %v237, %v239
  %v507 = vunpack.c.l.s4 1983009808
  %v508 = vunpack.c.0.s8 %v507
  %v509 = vlaneseq
  %v510 = vshrl.u32 %v509, 7
  %v511 = vsub.s32 %v508, %v510
  %v512 = vrot.slane %v504, %v511
  %v514 = vunpack.c.l.s4 1983009808
  %v515 = vunpack.c.0.s8 %v514
  %v516 = vlaneseq
  %v517 = vshrl.u32 %v516, 7
  %v518 = vsub.s32 %v515, %v517
  %v519 = vrot.slane %v505, %v518
  %v520 = vcombine.low %v512, %v519
  %v522 = vunpack.c.l.s4 1983009808
  %v523 = vunpack.c.0.s8 %v522
  %v524 = vlaneseq
  %v525 = vshrl.u32 %v524, 7
  %v526 = vsub.s32 %v523, %v525
  %v527 = vrot.slane %v247, %v526
  %vm529 = vcmask 80896
  %v531 = vsel %vm529, %v500, 0
  %v534 = vsel %vm529, %v501, 0
  %vm536 = vcmask 1041408
  %v537 = vsel %vm536, %v527, 0
  %539 = vmatprep.subr.mxu0 0.0
  %540 = vmatpush1.msra.mxu0 %v520
  %541 = vmatprep.subr.mxu0 0.0
  %542 = vmatpush1.msra.mxu0 %v537
  %543 = vmatprep.subr.mxu0 0.0
  %544 = vmatpush1.msra.mxu0 0.0
  %545 = vmatprep.subr.mxu0 0.0
  %546 = vmatpush1.msra.mxu0 0.0
  %547 = vmatprep.subr.mxu0 0.0
  %548 = vmatpush1.msra.mxu0 0.0
  %549 = vmatprep.subr.mxu0 0.0
  %550 = vmatpush1.msra.mxu0 0.0
  %551 = vmatprep.subr.mxu0 0.0
  %552 = vmatpush1.msra.mxu0 0.0
  %553 = vmatprep.subr.mxu0 0.0
  %554 = vmatpush1.msra.mxu0 0.0
  %555 = vmatprep.subr.mxu0 0.0
  %556 = vmatpush1.msra.mxu0 0.0
  %557 = vmatprep.subr.mxu0 0.0
  %558 = vmatpush1.msra.mxu0 0.0
  %559 = vmatprep.subr.mxu0 0.0
  %560 = vmatpush1.msra.mxu0 0.0
  %561 = vmatprep.subr.mxu0 0.0
  %562 = vmatpush1.msra.mxu0 0.0
  %563 = vmatprep.subr.mxu0 0.0
  %564 = vmatpush1.msra.mxu0 0.0
  %565 = vmatprep.subr.mxu0 0.0
  %566 = vmatpush1.msra.mxu0 0.0
  %567 = vmatprep.subr.mxu0 0.0
  %568 = vmatpush1.msra.mxu0 0.0
  %569 = vmatprep.subr.mxu0 0.0
  %570 = vmatpush1.msra.mxu0 0.0
  %571 = vmatprep.subr.mxu0 0.0
  %572 = vmatpush1.msra.mxu0 0.0
  %573 = vmatprep.subr.mxu0 0.0
  %574 = vmatpush1.msra.mxu0 0.0
  %575 = vmatprep.subr.mxu0 0.0
  %576 = vmatpush1.msra.mxu0 0.0
  %577 = vmatprep.subr.mxu0 0.0
  %578 = vmatpush1.msra.mxu0 0.0
  %579 = vmatprep.subr.mxu0 0.0
  %580 = vmatpush1.msra.mxu0 0.0
  %581 = vmatprep.subr.mxu0 0.0
  %582 = vmatpush1.msra.mxu0 0.0
  %583 = vmatprep.subr.mxu0 0.0
  %584 = vmatpush1.msra.mxu0 0.0
  %585 = vmatprep.subr.mxu0 0.0
  %586 = vmatpush1.msra.mxu0 0.0
  %587 = vmatprep.subr.mxu0 0.0
  %588 = vmatpush1.msra.mxu0 0.0
  %589 = vmatprep.subr.mxu0 0.0
  %590 = vmatpush1.msra.mxu0 0.0
  %591 = vmatprep.subr.mxu0 0.0
  %592 = vmatpush1.msra.mxu0 0.0
  %593 = vmatprep.subr.mxu0 0.0
  %594 = vmatpush1.msra.mxu0 0.0
  %595 = vmatprep.subr.mxu0 0.0
  %596 = vmatpush1.msra.mxu0 0.0
  %597 = vmatprep.subr.mxu0 0.0
  %598 = vmatpush1.msra.mxu0 0.0
  %599 = vmatprep.subr.mxu0 0.0
  %600 = vmatpush1.msra.mxu0 0.0
  %601 = vmatprep.subr.mxu0 0.0
  %602 = vmatpush1.msra.mxu0 0.0
  %603 = vmatprep.mubr.f32.mxu0 0.0
  %604 = vmatmul.mubr.f32.gmra.mrb[0].mxu0 %v531
  %v605 = vpop.f32.mrb[0].mxu0
  %v606 = vadd.f32 %v37, %v605
  %v607 = vpop.f32.mrb[0].mxu0
  %608 = vmatprep.mubr.f32.mxu0 0.0
  %609 = vmatmul.mubr.f32.gmra.mrb[0].mxu0 %v534
  %v610 = vpop.f32.mrb[0].mxu0
  %v611 = vadd.f32 %v38, %v610
  %v612 = vpop.f32.mrb[0].mxu0
  %613 = vdwg.mxu0
  %v614 = vcombine.low %v255, %v254
  %v615 = vcombine.low %v256, %v263
  %v617 = vunpack.c.l.s4 1983009808
  %v618 = vunpack.c.0.s8 %v617
  %v619 = vlaneseq
  %v620 = vshrl.u32 %v619, 7
  %v621 = vsub.s32 %v618, %v620
  %v622 = vrot.slane %v614, %v621
  %v624 = vunpack.c.l.s4 1983009808
  %v625 = vunpack.c.0.s8 %v624
  %v626 = vlaneseq
  %v627 = vshrl.u32 %v626, 7
  %v628 = vsub.s32 %v625, %v627
  %v629 = vrot.slane %v615, %v628
  %v630 = vcombine.low %v622, %v629
  %v632 = vunpack.c.l.s4 1983009808
  %v633 = vunpack.c.0.s8 %v632
  %v634 = vlaneseq
  %v635 = vshrl.u32 %v634, 7
  %v636 = vsub.s32 %v633, %v635
  %v637 = vrot.slane %v264, %v636
  %v640 = vsel %vm529, %v502, 0
  %v643 = vsel %vm529, %v503, 0
  %v645 = vsel %vm536, %v637, 0
  %647 = vmatprep.subr.mxu0 0.0
  %648 = vmatpush1.msra.mxu0 %v630
  %649 = vmatprep.subr.mxu0 0.0
  %650 = vmatpush1.msra.mxu0 %v645
  %651 = vmatprep.subr.mxu0 0.0
  %652 = vmatpush1.msra.mxu0 0.0
  %653 = vmatprep.subr.mxu0 0.0
  %654 = vmatpush1.msra.mxu0 0.0
  %655 = vmatprep.subr.mxu0 0.0
  %656 = vmatpush1.msra.mxu0 0.0
  %657 = vmatprep.subr.mxu0 0.0
  %658 = vmatpush1.msra.mxu0 0.0
  %659 = vmatprep.subr.mxu0 0.0
  %660 = vmatpush1.msra.mxu0 0.0
  %661 = vmatprep.subr.mxu0 0.0
  %662 = vmatpush1.msra.mxu0 0.0
  %663 = vmatprep.subr.mxu0 0.0
  %664 = vmatpush1.msra.mxu0 0.0
  %665 = vmatprep.subr.mxu0 0.0
  %666 = vmatpush1.msra.mxu0 0.0
  %667 = vmatprep.subr.mxu0 0.0
  %668 = vmatpush1.msra.mxu0 0.0
  %669 = vmatprep.subr.mxu0 0.0
  %670 = vmatpush1.msra.mxu0 0.0
  %671 = vmatprep.subr.mxu0 0.0
  %672 = vmatpush1.msra.mxu0 0.0
  %673 = vmatprep.subr.mxu0 0.0
  %674 = vmatpush1.msra.mxu0 0.0
  %675 = vmatprep.subr.mxu0 0.0
  %676 = vmatpush1.msra.mxu0 0.0
  %677 = vmatprep.subr.mxu0 0.0
  %678 = vmatpush1.msra.mxu0 0.0
  %679 = vmatprep.subr.mxu0 0.0
  %680 = vmatpush1.msra.mxu0 0.0
  %681 = vmatprep.subr.mxu0 0.0
  %682 = vmatpush1.msra.mxu0 0.0
  %683 = vmatprep.subr.mxu0 0.0
  %684 = vmatpush1.msra.mxu0 0.0
  %685 = vmatprep.subr.mxu0 0.0
  %686 = vmatpush1.msra.mxu0 0.0
  %687 = vmatprep.subr.mxu0 0.0
  %688 = vmatpush1.msra.mxu0 0.0
  %689 = vmatprep.subr.mxu0 0.0
  %690 = vmatpush1.msra.mxu0 0.0
  %691 = vmatprep.subr.mxu0 0.0
  %692 = vmatpush1.msra.mxu0 0.0
  %693 = vmatprep.subr.mxu0 0.0
  %694 = vmatpush1.msra.mxu0 0.0
  %695 = vmatprep.subr.mxu0 0.0
  %696 = vmatpush1.msra.mxu0 0.0
  %697 = vmatprep.subr.mxu0 0.0
  %698 = vmatpush1.msra.mxu0 0.0
  %699 = vmatprep.subr.mxu0 0.0
  %700 = vmatpush1.msra.mxu0 0.0
  %701 = vmatprep.subr.mxu0 0.0
  %702 = vmatpush1.msra.mxu0 0.0
  %703 = vmatprep.subr.mxu0 0.0
  %704 = vmatpush1.msra.mxu0 0.0
  %705 = vmatprep.subr.mxu0 0.0
  %706 = vmatpush1.msra.mxu0 0.0
  %707 = vmatprep.subr.mxu0 0.0
  %708 = vmatpush1.msra.mxu0 0.0
  %709 = vmatprep.subr.mxu0 0.0
  %710 = vmatpush1.msra.mxu0 0.0
  %711 = vmatprep.mubr.f32.mxu0 0.0
  %712 = vmatmul.mubr.f32.gmra.mrb[0].mxu0 %v640
  %v713 = vpop.f32.mrb[0].mxu0
  %v714 = vadd.f32 %v37, %v713
  %v715 = vpop.f32.mrb[0].mxu0
  %716 = vmatprep.mubr.f32.mxu0 0.0
  %717 = vmatmul.mubr.f32.gmra.mrb[0].mxu0 %v643
  %v718 = vpop.f32.mrb[0].mxu0
  %v719 = vadd.f32 %v38, %v718
  %v720 = vpop.f32.mrb[0].mxu0
  %721 = vdwg.mxu0
  %s722 = scalar_lea.vmem %s3, 16
  %v723 = vld [vmem:[%s722] sm:$0xff]
  %v724 = vld [vmem:[%s722 + $0x8] sm:$0x3]
  %s725 = scalar_lea.vmem %s3, 32
  %v726 = vld [vmem:[%s725] sm:$0xff]
  %v727 = vld [vmem:[%s725 + $0x8] sm:$0x3]
  %v728 = vsel %vm133, %v606, 0.0
  %v729 = vsel %vm133, %v714, 0.0
  %v730 = vadd.f32 %v728, %v729
  %v731 = vsel %vm430, %v611, 0.0
  %v732 = vsel %vm430, %v719, 0.0
  %v733 = vadd.f32 %v731, %v732
  %v734 = vrcp.pop 2.0
  %v735 = vmul.f32 %v730, %v734
  %v736 = vmul.f32 %v733, %v734
  %v737 = vsub.f32 %v606, %v735
  %v738 = vsub.f32 %v611, %v736
  %v739 = vsub.f32 %v714, %v735
  %v740 = vsub.f32 %v719, %v736
  %v741 = vmul.f32 %v737, %v737
  %v742 = vmul.f32 %v738, %v738
  %v743 = vmul.f32 %v739, %v739
  %v744 = vmul.f32 %v740, %v740
  %v745 = vsel %vm133, %v741, 0.0
  %v746 = vsel %vm133, %v743, 0.0
  %v747 = vadd.f32 %v745, %v746
  %v748 = vsel %vm430, %v742, 0.0
  %v749 = vsel %vm430, %v744, 0.0
  %v750 = vadd.f32 %v748, %v749
  %v751 = vmul.f32 %v747, %v734
  %v752 = vmul.f32 %v750, %v734
  %v753 = vadd.f32 %v751, 1e-05
  %v754 = vadd.f32 %v752, 1e-05
  %v755 = vrsqrt.pop %v753
  %v756 = vrsqrt.pop %v754
  %v757 = vmul.f32 %v737, %v755
  %v758 = vmul.f32 %v738, %v756
  %v759 = vmul.f32 %v739, %v755
  %v760 = vmul.f32 %v740, %v756
  %v761 = vmul.f32 %v757, %v723
  %v762 = vmul.f32 %v758, %v724
  %v763 = vmul.f32 %v759, %v723
  %v764 = vmul.f32 %v760, %v724
  %v765 = vadd.f32 %v761, %v726
  %v766 = vadd.f32 %v762, %v727
  %v767 = vadd.f32 %v763, %v726
  %v768 = vadd.f32 %v764, %v727
  %v769 = vmax.f32 %v765, 0.0
  %v770 = vmax.f32 %v766, 0.0
  %v771 = vmax.f32 %v767, 0.0
  %v772 = vmax.f32 %v768, 0.0
  %v773 = vadd.f32 %v769, %v17
  %v774 = vadd.f32 %v770, %v18
  %v775 = vadd.f32 %v771, %v19
  %v776 = vadd.f32 %v772, %v20
  %s777 = scalar_lea.vmem %s2, 32
  %v778 = vld [vmem:[%s777] sm:$0xff]
  %v779 = vld [vmem:[%s777 + $0x8] sm:$0xff]
  %v780 = vld [vmem:[%s777 + $0x10] sm:$0xff]
  %v781 = vld [vmem:[%s777 + $0x18] sm:$0xff]
  %s782 = scalar_lea.vmem %s3, 48
  %v783 = vld [vmem:[%s782] sm:$0xff]
  %v784 = vld [vmem:[%s782 + $0x8] sm:$0x3]
  %v789 = vcombine.high %v773, %v773
  %v791 = vunpack.c.l.s4 1983009808
  %v792 = vunpack.c.0.s8 %v791
  %v793 = vlaneseq
  %v794 = vshrl.u32 %v793, 7
  %v795 = vsub.s32 %v792, %v794
  %v796 = vrot.slane %v773, %v795
  %v798 = vunpack.c.l.s4 1983009808
  %v799 = vunpack.c.0.s8 %v798
  %v800 = vlaneseq
  %v801 = vshrl.u32 %v800, 7
  %v802 = vsub.s32 %v799, %v801
  %v803 = vrot.slane %v789, %v802
  %v804 = vcombine.high %v796, %v796
  %v805 = vcombine.high %v803, %v803
  %v807 = vunpack.c.l.s4 1983009808
  %v808 = vunpack.c.0.s8 %v807
  %v809 = vlaneseq
  %v810 = vshrl.u32 %v809, 7
  %v811 = vsub.s32 %v808, %v810
  %v812 = vrot.slane %v774, %v811
  %v813 = vcombine.high %v775, %v775
  %v815 = vunpack.c.l.s4 1983009808
  %v816 = vunpack.c.0.s8 %v815
  %v817 = vlaneseq
  %v818 = vshrl.u32 %v817, 7
  %v819 = vsub.s32 %v816, %v818
  %v820 = vrot.slane %v775, %v819
  %v822 = vunpack.c.l.s4 1983009808
  %v823 = vunpack.c.0.s8 %v822
  %v824 = vlaneseq
  %v825 = vshrl.u32 %v824, 7
  %v826 = vsub.s32 %v823, %v825
  %v827 = vrot.slane %v813, %v826
  %v828 = vcombine.high %v820, %v820
  %v829 = vcombine.high %v827, %v827
  %v831 = vunpack.c.l.s4 1983009808
  %v832 = vunpack.c.0.s8 %v831
  %v833 = vlaneseq
  %v834 = vshrl.u32 %v833, 7
  %v835 = vsub.s32 %v832, %v834
  %v836 = vrot.slane %v776, %v835
  %v837 = vcombine.low %v796, %v804
  %v838 = vcombine.low %v803, %v805
  %v840 = vunpack.c.l.s4 1983009808
  %v841 = vunpack.c.0.s8 %v840
  %v842 = vlaneseq
  %v843 = vshrl.u32 %v842, 7
  %v844 = vsub.s32 %v841, %v843
  %v845 = vrot.slane %v837, %v844
  %v847 = vunpack.c.l.s4 1983009808
  %v848 = vunpack.c.0.s8 %v847
  %v849 = vlaneseq
  %v850 = vshrl.u32 %v849, 7
  %v851 = vsub.s32 %v848, %v850
  %v852 = vrot.slane %v838, %v851
  %v853 = vcombine.low %v845, %v852
  %v854 = vcombine.low %v812, %v820
  %v855 = vcombine.low %v828, %v827
  %v857 = vunpack.c.l.s4 1983009808
  %v858 = vunpack.c.0.s8 %v857
  %v859 = vlaneseq
  %v860 = vshrl.u32 %v859, 7
  %v861 = vsub.s32 %v858, %v860
  %v862 = vrot.slane %v854, %v861
  %v864 = vunpack.c.l.s4 1983009808
  %v865 = vunpack.c.0.s8 %v864
  %v866 = vlaneseq
  %v867 = vshrl.u32 %v866, 7
  %v868 = vsub.s32 %v865, %v867
  %v869 = vrot.slane %v855, %v868
  %v870 = vcombine.low %v862, %v869
  %v871 = vcombine.low %v829, %v836
  %v873 = vunpack.c.l.s4 1983009808
  %v874 = vunpack.c.0.s8 %v873
  %v875 = vlaneseq
  %v876 = vshrl.u32 %v875, 7
  %v877 = vsub.s32 %v874, %v876
  %v878 = vrot.slane %v871, %v877
  %v879 = vsel %vm133, %v853, 0
  %v881 = vsel %vm133, %v870, 0
  %v883 = vsel %vm133, %v878, 0
  %885 = vmatprep.subr.mxu0 0.0
  %886 = vmatpush1.msra.mxu0 %v778
  %887 = vmatprep.subr.mxu0 0.0
  %888 = vmatpush1.msra.mxu0 %v779
  %889 = vmatprep.subr.mxu0 0.0
  %890 = vmatpush1.msra.mxu0 %v780
  %891 = vmatprep.subr.mxu0 0.0
  %892 = vmatpush1.msra.mxu0 %v781
  %893 = vmatprep.subr.mxu0 0.0
  %894 = vmatpush1.msra.mxu0 0.0
  %895 = vmatprep.subr.mxu0 0.0
  %896 = vmatpush1.msra.mxu0 0.0
  %897 = vmatprep.subr.mxu0 0.0
  %898 = vmatpush1.msra.mxu0 0.0
  %899 = vmatprep.subr.mxu0 0.0
  %900 = vmatpush1.msra.mxu0 0.0
  %901 = vmatprep.subr.mxu0 0.0
  %902 = vmatpush1.msra.mxu0 0.0
  %903 = vmatprep.subr.mxu0 0.0
  %904 = vmatpush1.msra.mxu0 0.0
  %905 = vmatprep.subr.mxu0 0.0
  %906 = vmatpush1.msra.mxu0 0.0
  %907 = vmatprep.subr.mxu0 0.0
  %908 = vmatpush1.msra.mxu0 0.0
  %909 = vmatprep.subr.mxu0 0.0
  %910 = vmatpush1.msra.mxu0 0.0
  %911 = vmatprep.subr.mxu0 0.0
  %912 = vmatpush1.msra.mxu0 0.0
  %913 = vmatprep.subr.mxu0 0.0
  %914 = vmatpush1.msra.mxu0 0.0
  %915 = vmatprep.subr.mxu0 0.0
  %916 = vmatpush1.msra.mxu0 0.0
  %917 = vmatprep.subr.mxu0 0.0
  %918 = vmatpush1.msra.mxu0 0.0
  %919 = vmatprep.subr.mxu0 0.0
  %920 = vmatpush1.msra.mxu0 0.0
  %921 = vmatprep.subr.mxu0 0.0
  %922 = vmatpush1.msra.mxu0 0.0
  %923 = vmatprep.subr.mxu0 0.0
  %924 = vmatpush1.msra.mxu0 0.0
  %925 = vmatprep.subr.mxu0 0.0
  %926 = vmatpush1.msra.mxu0 0.0
  %927 = vmatprep.subr.mxu0 0.0
  %928 = vmatpush1.msra.mxu0 0.0
  %929 = vmatprep.subr.mxu0 0.0
  %930 = vmatpush1.msra.mxu0 0.0
  %931 = vmatprep.subr.mxu0 0.0
  %932 = vmatpush1.msra.mxu0 0.0
  %933 = vmatprep.subr.mxu0 0.0
  %934 = vmatpush1.msra.mxu0 0.0
  %935 = vmatprep.subr.mxu0 0.0
  %936 = vmatpush1.msra.mxu0 0.0
  %937 = vmatprep.subr.mxu0 0.0
  %938 = vmatpush1.msra.mxu0 0.0
  %939 = vmatprep.subr.mxu0 0.0
  %940 = vmatpush1.msra.mxu0 0.0
  %941 = vmatprep.subr.mxu0 0.0
  %942 = vmatpush1.msra.mxu0 0.0
  %943 = vmatprep.subr.mxu0 0.0
  %944 = vmatpush1.msra.mxu0 0.0
  %945 = vmatprep.subr.mxu0 0.0
  %946 = vmatpush1.msra.mxu0 0.0
  %947 = vmatprep.subr.mxu0 0.0
  %948 = vmatpush1.msra.mxu0 0.0
  %949 = vmatprep.mubr.f32.mxu0 0.0
  %950 = vmatmul.mubr.f32.gmra.mrb[0].mxu0 %v879
  %v951 = vpop.f32.mrb[0].mxu0
  %v952 = vadd.f32 0.0, %v951
  %v953 = vpop.f32.mrb[0].mxu0
  %954 = vmatprep.mubr.f32.mxu0 0.0
  %955 = vmatmul.mubr.f32.gmra.mrb[0].mxu0 %v881
  %v956 = vpop.f32.mrb[0].mxu0
  %v957 = vadd.f32 0.0, %v956
  %v958 = vpop.f32.mrb[0].mxu0
  %959 = vmatprep.mubr.f32.mxu0 0.0
  %960 = vmatmul.mubr.f32.gmra.mrb[0].mxu0 %v883
  %v961 = vpop.f32.mrb[0].mxu0
  %v962 = vadd.f32 0.0, %v961
  %v963 = vpop.f32.mrb[0].mxu0
  %964 = vdwg.mxu0
  %v968 = vcombine.high %v952, %v952
  %v970 = vunpack.c.l.s4 1983009808
  %v971 = vunpack.c.0.s8 %v970
  %v972 = vlaneseq
  %v973 = vshrl.u32 %v972, 7
  %v974 = vsub.s32 %v971, %v973
  %v975 = vrot.slane %v952, %v974
  %v977 = vunpack.c.l.s4 1983009808
  %v978 = vunpack.c.0.s8 %v977
  %v979 = vlaneseq
  %v980 = vshrl.u32 %v979, 7
  %v981 = vsub.s32 %v978, %v980
  %v982 = vrot.slane %v968, %v981
  %v983 = vcombine.high %v975, %v975
  %v984 = vcombine.high %v982, %v982
  %v985 = vcombine.high %v957, %v957
  %v987 = vunpack.c.l.s4 1983009808
  %v988 = vunpack.c.0.s8 %v987
  %v989 = vlaneseq
  %v990 = vshrl.u32 %v989, 7
  %v991 = vsub.s32 %v988, %v990
  %v992 = vrot.slane %v957, %v991
  %v994 = vunpack.c.l.s4 1983009808
  %v995 = vunpack.c.0.s8 %v994
  %v996 = vlaneseq
  %v997 = vshrl.u32 %v996, 7
  %v998 = vsub.s32 %v995, %v997
  %v999 = vrot.slane %v985, %v998
  %v1000 = vcombine.high %v992, %v992
  %v1001 = vcombine.high %v999, %v999
  %v1003 = vunpack.c.l.s4 1983009808
  %v1004 = vunpack.c.0.s8 %v1003
  %v1005 = vlaneseq
  %v1006 = vshrl.u32 %v1005, 7
  %v1007 = vsub.s32 %v1004, %v1006
  %v1008 = vrot.slane %v962, %v1007
  %v1009 = vcombine.high %v1008, %v1008
  %v1010 = vsel %vm133, %v773, 0
  %v1012 = vsel %vm133, %v774, 0
  %1014 = vmatprep.subr.mxu0 0.0
  %1015 = vmatpush1.xpose.msra.mxu0 %v1010
  %1016 = vmatprep.subr.mxu0 0.0
  %1017 = vmatpush1.xpose.msra.mxu0 %v1012
  %1018 = vmatprep.subr.mxu0 0.0
  %1019 = vmatpush1.xpose.msra.mxu0 0.0
  %1020 = vmatprep.subr.mxu0 0.0
  %1021 = vmatpush1.xpose.msra.mxu0 0.0
  %1022 = vmatprep.subr.mxu0 0.0
  %1023 = vmatpush1.xpose.msra.mxu0 0.0
  %1024 = vmatprep.subr.mxu0 0.0
  %1025 = vmatpush1.xpose.msra.mxu0 0.0
  %1026 = vmatprep.subr.mxu0 0.0
  %1027 = vmatpush1.xpose.msra.mxu0 0.0
  %1028 = vmatprep.subr.mxu0 0.0
  %1029 = vmatpush1.xpose.msra.mxu0 0.0
  %1030 = vmatprep.subr.mxu0 0.0
  %1031 = vmatpush1.xpose.msra.mxu0 0.0
  %1032 = vmatprep.subr.mxu0 0.0
  %1033 = vmatpush1.xpose.msra.mxu0 0.0
  %1034 = vmatprep.subr.mxu0 0.0
  %1035 = vmatpush1.xpose.msra.mxu0 0.0
  %1036 = vmatprep.subr.mxu0 0.0
  %1037 = vmatpush1.xpose.msra.mxu0 0.0
  %1038 = vmatprep.subr.mxu0 0.0
  %1039 = vmatpush1.xpose.msra.mxu0 0.0
  %1040 = vmatprep.subr.mxu0 0.0
  %1041 = vmatpush1.xpose.msra.mxu0 0.0
  %1042 = vmatprep.subr.mxu0 0.0
  %1043 = vmatpush1.xpose.msra.mxu0 0.0
  %1044 = vmatprep.subr.mxu0 0.0
  %1045 = vmatpush1.xpose.msra.mxu0 0.0
  %1046 = vmatprep.subr.mxu0 0.0
  %1047 = vmatpush1.xpose.msra.mxu0 0.0
  %1048 = vmatprep.subr.mxu0 0.0
  %1049 = vmatpush1.xpose.msra.mxu0 0.0
  %1050 = vmatprep.subr.mxu0 0.0
  %1051 = vmatpush1.xpose.msra.mxu0 0.0
  %1052 = vmatprep.subr.mxu0 0.0
  %1053 = vmatpush1.xpose.msra.mxu0 0.0
  %1054 = vmatprep.subr.mxu0 0.0
  %1055 = vmatpush1.xpose.msra.mxu0 0.0
  %1056 = vmatprep.subr.mxu0 0.0
  %1057 = vmatpush1.xpose.msra.mxu0 0.0
  %1058 = vmatprep.subr.mxu0 0.0
  %1059 = vmatpush1.xpose.msra.mxu0 0.0
  %1060 = vmatprep.subr.mxu0 0.0
  %1061 = vmatpush1.xpose.msra.mxu0 0.0
  %1062 = vmatprep.subr.mxu0 0.0
  %1063 = vmatpush1.xpose.msra.mxu0 0.0
  %1064 = vmatprep.subr.mxu0 0.0
  %1065 = vmatpush1.xpose.msra.mxu0 0.0
  %1066 = vmatprep.subr.mxu0 0.0
  %1067 = vmatpush1.xpose.msra.mxu0 0.0
  %1068 = vmatprep.subr.mxu0 0.0
  %1069 = vmatpush1.xpose.msra.mxu0 0.0
  %1070 = vmatprep.subr.mxu0 0.0
  %1071 = vmatpush1.xpose.msra.mxu0 0.0
  %1072 = vmatprep.subr.mxu0 0.0
  %1073 = vmatpush1.xpose.msra.mxu0 0.0
  %1074 = vmatprep.subr.mxu0 0.0
  %1075 = vmatpush1.xpose.msra.mxu0 0.0
  %1076 = vmatprep.subr.mxu0 0.0
  %1077 = vmatpush1.xpose.msra.mxu0 0.0
  %1078 = vmatprep.mubr.f32.mxu0 0.0
  %1079 = vmatmul.mubr.f32.gmra.mrb[0].mxu0 %v1010
  %v1080 = vpop.f32.mrb[0].mxu0
  %v1081 = vadd.f32 0.0, %v1080
  %v1082 = vpop.f32.mrb[0].mxu0
  %1083 = vmatprep.mubr.f32.mxu0 0.0
  %1084 = vmatmul.mubr.f32.gmra.mrb[0].mxu0 %v1012
  %v1085 = vpop.f32.mrb[0].mxu0
  %v1086 = vadd.f32 0.0, %v1085
  %v1087 = vpop.f32.mrb[0].mxu0
  %1088 = vdwg.mxu0
  %v1089 = vsel %vm133, %v775, 0
  %v1091 = vsel %vm133, %v776, 0
  %1093 = vmatprep.subr.mxu0 0.0
  %1094 = vmatpush1.xpose.msra.mxu0 %v1089
  %1095 = vmatprep.subr.mxu0 0.0
  %1096 = vmatpush1.xpose.msra.mxu0 %v1091
  %1097 = vmatprep.subr.mxu0 0.0
  %1098 = vmatpush1.xpose.msra.mxu0 0.0
  %1099 = vmatprep.subr.mxu0 0.0
  %1100 = vmatpush1.xpose.msra.mxu0 0.0
  %1101 = vmatprep.subr.mxu0 0.0
  %1102 = vmatpush1.xpose.msra.mxu0 0.0
  %1103 = vmatprep.subr.mxu0 0.0
  %1104 = vmatpush1.xpose.msra.mxu0 0.0
  %1105 = vmatprep.subr.mxu0 0.0
  %1106 = vmatpush1.xpose.msra.mxu0 0.0
  %1107 = vmatprep.subr.mxu0 0.0
  %1108 = vmatpush1.xpose.msra.mxu0 0.0
  %1109 = vmatprep.subr.mxu0 0.0
  %1110 = vmatpush1.xpose.msra.mxu0 0.0
  %1111 = vmatprep.subr.mxu0 0.0
  %1112 = vmatpush1.xpose.msra.mxu0 0.0
  %1113 = vmatprep.subr.mxu0 0.0
  %1114 = vmatpush1.xpose.msra.mxu0 0.0
  %1115 = vmatprep.subr.mxu0 0.0
  %1116 = vmatpush1.xpose.msra.mxu0 0.0
  %1117 = vmatprep.subr.mxu0 0.0
  %1118 = vmatpush1.xpose.msra.mxu0 0.0
  %1119 = vmatprep.subr.mxu0 0.0
  %1120 = vmatpush1.xpose.msra.mxu0 0.0
  %1121 = vmatprep.subr.mxu0 0.0
  %1122 = vmatpush1.xpose.msra.mxu0 0.0
  %1123 = vmatprep.subr.mxu0 0.0
  %1124 = vmatpush1.xpose.msra.mxu0 0.0
  %1125 = vmatprep.subr.mxu0 0.0
  %1126 = vmatpush1.xpose.msra.mxu0 0.0
  %1127 = vmatprep.subr.mxu0 0.0
  %1128 = vmatpush1.xpose.msra.mxu0 0.0
  %1129 = vmatprep.subr.mxu0 0.0
  %1130 = vmatpush1.xpose.msra.mxu0 0.0
  %1131 = vmatprep.subr.mxu0 0.0
  %1132 = vmatpush1.xpose.msra.mxu0 0.0
  %1133 = vmatprep.subr.mxu0 0.0
  %1134 = vmatpush1.xpose.msra.mxu0 0.0
  %1135 = vmatprep.subr.mxu0 0.0
  %1136 = vmatpush1.xpose.msra.mxu0 0.0
  %1137 = vmatprep.subr.mxu0 0.0
  %1138 = vmatpush1.xpose.msra.mxu0 0.0
  %1139 = vmatprep.subr.mxu0 0.0
  %1140 = vmatpush1.xpose.msra.mxu0 0.0
  %1141 = vmatprep.subr.mxu0 0.0
  %1142 = vmatpush1.xpose.msra.mxu0 0.0
  %1143 = vmatprep.subr.mxu0 0.0
  %1144 = vmatpush1.xpose.msra.mxu0 0.0
  %1145 = vmatprep.subr.mxu0 0.0
  %1146 = vmatpush1.xpose.msra.mxu0 0.0
  %1147 = vmatprep.subr.mxu0 0.0
  %1148 = vmatpush1.xpose.msra.mxu0 0.0
  %1149 = vmatprep.subr.mxu0 0.0
  %1150 = vmatpush1.xpose.msra.mxu0 0.0
  %1151 = vmatprep.subr.mxu0 0.0
  %1152 = vmatpush1.xpose.msra.mxu0 0.0
  %1153 = vmatprep.subr.mxu0 0.0
  %1154 = vmatpush1.xpose.msra.mxu0 0.0
  %1155 = vmatprep.subr.mxu0 0.0
  %1156 = vmatpush1.xpose.msra.mxu0 0.0
  %1157 = vmatprep.mubr.f32.mxu0 0.0
  %1158 = vmatmul.mubr.f32.gmra.mrb[0].mxu0 %v1089
  %v1159 = vpop.f32.mrb[0].mxu0
  %v1160 = vadd.f32 0.0, %v1159
  %v1161 = vpop.f32.mrb[0].mxu0
  %1162 = vmatprep.mubr.f32.mxu0 0.0
  %1163 = vmatmul.mubr.f32.gmra.mrb[0].mxu0 %v1091
  %v1164 = vpop.f32.mrb[0].mxu0
  %v1165 = vadd.f32 0.0, %v1164
  %v1166 = vpop.f32.mrb[0].mxu0
  %1167 = vdwg.mxu0
  %v1168 = vmul.f32 %v773, %v773
  %v1169 = vmul.f32 %v774, %v774
  %v1170 = vmul.f32 %v775, %v775
  %v1171 = vmul.f32 %v776, %v776
  %v1172 = vsel %vm133, %v1168, 0.0
  %1173 = vadd.xlane.f32.xlu0 %v1172
  %v1174 = vpop.xlane.xlu0 %1173
  %v1175 = vsel %vm430, %v1169, 0.0
  %1176 = vadd.xlane.f32.xlu0 %v1175
  %v1177 = vpop.xlane.xlu0 %1176
  %v1178 = vsel %vm133, %v1170, 0.0
  %1179 = vadd.xlane.f32.xlu0 %v1178
  %v1180 = vpop.xlane.xlu0 %1179
  %v1181 = vsel %vm430, %v1171, 0.0
  %1182 = vadd.xlane.f32.xlu0 %v1181
  %v1183 = vpop.xlane.xlu0 %1182
  %v1184 = vrsqrt.pop %v1174
  %v1185 = vrsqrt.pop %v1177
  %v1186 = vrsqrt.pop %v1180
  %v1187 = vrsqrt.pop %v1183
  %v1192 = vlaneseq
  %v1193 = vshrl.u32 %v1192, 7
  %v1194 = vsub.s32 %v449, %v1193
  %v1195 = vrot.slane %v1184, %v1194
  %v1196 = vlaneseq
  %v1197 = vshrl.u32 %v1196, 7
  %v1198 = vsub.s32 %v454, %v1197
  %v1199 = vrot.slane %v1185, %v1198
  %v1200 = vsel %vm459, %v1199, %v1195
  %v1201 = vlaneseq
  %v1202 = vshrl.u32 %v1201, 7
  %v1203 = vsub.s32 %v449, %v1202
  %v1204 = vrot.slane %v1186, %v1203
  %v1205 = vlaneseq
  %v1206 = vshrl.u32 %v1205, 7
  %v1207 = vsub.s32 %v454, %v1206
  %v1208 = vrot.slane %v1187, %v1207
  %v1209 = vsel %vm459, %v1208, %v1204
  %v1210 = vsel %vm470, %v1200, %v1200
  %v1211 = vsel %vm472, %v1200, %v1210
  %v1212 = vsel %vm474, %v1200, %v1211
  %v1213 = vsel %vm476, %v1200, %v1212
  %v1214 = vsel %vm478, %v1200, %v1213
  %v1215 = vsel %vm480, %v1200, %v1214
  %v1216 = vsel %vm470, %v1209, %v1209
  %v1217 = vsel %vm472, %v1209, %v1216
  %v1218 = vsel %vm474, %v1209, %v1217
  %v1219 = vsel %vm476, %v1209, %v1218
  %v1220 = vsel %vm478, %v1209, %v1219
  %v1221 = vsel %vm480, %v1209, %v1220
  %v1226 = vmul.f32 %v1184, %v1215
  %v1227 = vmul.f32 %v1185, %v1200
  %v1228 = vmul.f32 %v1186, %v1221
  %v1229 = vmul.f32 %v1187, %v1209
  %v1230 = vmul.f32 %v1081, %v1226
  %v1231 = vmul.f32 %v1086, %v1227
  %v1232 = vmul.f32 %v1160, %v1228
  %v1233 = vmul.f32 %v1165, %v1229
  %v1234 = vmul.f32 %v31, %v1230
  %v1235 = vmul.f32 %v32, %v1231
  %v1236 = vmul.f32 %v31, %v1232
  %v1237 = vmul.f32 %v32, %v1233
  %v1238 = vcombine.low %v975, %v983
  %v1239 = vcombine.low %v982, %v984
  %v1241 = vunpack.c.l.s4 1983009808
  %v1242 = vunpack.c.0.s8 %v1241
  %v1243 = vlaneseq
  %v1244 = vshrl.u32 %v1243, 7
  %v1245 = vsub.s32 %v1242, %v1244
  %v1246 = vrot.slane %v1238, %v1245
  %v1248 = vunpack.c.l.s4 1983009808
  %v1249 = vunpack.c.0.s8 %v1248
  %v1250 = vlaneseq
  %v1251 = vshrl.u32 %v1250, 7
  %v1252 = vsub.s32 %v1249, %v1251
  %v1253 = vrot.slane %v1239, %v1252
  %v1254 = vcombine.low %v1246, %v1253
  %v1256 = vunpack.c.l.s4 1983009808
  %v1257 = vunpack.c.0.s8 %v1256
  %v1258 = vlaneseq
  %v1259 = vshrl.u32 %v1258, 7
  %v1260 = vsub.s32 %v1257, %v1259
  %v1261 = vrot.slane %v992, %v1260
  %v1264 = vsel %vm529, %v1234, 0
  %v1267 = vsel %vm529, %v1235, 0
  %v1269 = vsel %vm536, %v1261, 0
  %1271 = vmatprep.subr.mxu0 0.0
  %1272 = vmatpush1.msra.mxu0 %v1254
  %1273 = vmatprep.subr.mxu0 0.0
  %1274 = vmatpush1.msra.mxu0 %v1269
  %1275 = vmatprep.subr.mxu0 0.0
  %1276 = vmatpush1.msra.mxu0 0.0
  %1277 = vmatprep.subr.mxu0 0.0
  %1278 = vmatpush1.msra.mxu0 0.0
  %1279 = vmatprep.subr.mxu0 0.0
  %1280 = vmatpush1.msra.mxu0 0.0
  %1281 = vmatprep.subr.mxu0 0.0
  %1282 = vmatpush1.msra.mxu0 0.0
  %1283 = vmatprep.subr.mxu0 0.0
  %1284 = vmatpush1.msra.mxu0 0.0
  %1285 = vmatprep.subr.mxu0 0.0
  %1286 = vmatpush1.msra.mxu0 0.0
  %1287 = vmatprep.subr.mxu0 0.0
  %1288 = vmatpush1.msra.mxu0 0.0
  %1289 = vmatprep.subr.mxu0 0.0
  %1290 = vmatpush1.msra.mxu0 0.0
  %1291 = vmatprep.subr.mxu0 0.0
  %1292 = vmatpush1.msra.mxu0 0.0
  %1293 = vmatprep.subr.mxu0 0.0
  %1294 = vmatpush1.msra.mxu0 0.0
  %1295 = vmatprep.subr.mxu0 0.0
  %1296 = vmatpush1.msra.mxu0 0.0
  %1297 = vmatprep.subr.mxu0 0.0
  %1298 = vmatpush1.msra.mxu0 0.0
  %1299 = vmatprep.subr.mxu0 0.0
  %1300 = vmatpush1.msra.mxu0 0.0
  %1301 = vmatprep.subr.mxu0 0.0
  %1302 = vmatpush1.msra.mxu0 0.0
  %1303 = vmatprep.subr.mxu0 0.0
  %1304 = vmatpush1.msra.mxu0 0.0
  %1305 = vmatprep.subr.mxu0 0.0
  %1306 = vmatpush1.msra.mxu0 0.0
  %1307 = vmatprep.subr.mxu0 0.0
  %1308 = vmatpush1.msra.mxu0 0.0
  %1309 = vmatprep.subr.mxu0 0.0
  %1310 = vmatpush1.msra.mxu0 0.0
  %1311 = vmatprep.subr.mxu0 0.0
  %1312 = vmatpush1.msra.mxu0 0.0
  %1313 = vmatprep.subr.mxu0 0.0
  %1314 = vmatpush1.msra.mxu0 0.0
  %1315 = vmatprep.subr.mxu0 0.0
  %1316 = vmatpush1.msra.mxu0 0.0
  %1317 = vmatprep.subr.mxu0 0.0
  %1318 = vmatpush1.msra.mxu0 0.0
  %1319 = vmatprep.subr.mxu0 0.0
  %1320 = vmatpush1.msra.mxu0 0.0
  %1321 = vmatprep.subr.mxu0 0.0
  %1322 = vmatpush1.msra.mxu0 0.0
  %1323 = vmatprep.subr.mxu0 0.0
  %1324 = vmatpush1.msra.mxu0 0.0
  %1325 = vmatprep.subr.mxu0 0.0
  %1326 = vmatpush1.msra.mxu0 0.0
  %1327 = vmatprep.subr.mxu0 0.0
  %1328 = vmatpush1.msra.mxu0 0.0
  %1329 = vmatprep.subr.mxu0 0.0
  %1330 = vmatpush1.msra.mxu0 0.0
  %1331 = vmatprep.subr.mxu0 0.0
  %1332 = vmatpush1.msra.mxu0 0.0
  %1333 = vmatprep.subr.mxu0 0.0
  %1334 = vmatpush1.msra.mxu0 0.0
  %1335 = vmatprep.mubr.f32.mxu0 0.0
  %1336 = vmatmul.mubr.f32.gmra.mrb[0].mxu0 %v1264
  %v1337 = vpop.f32.mrb[0].mxu0
  %v1338 = vadd.f32 %v783, %v1337
  %v1339 = vpop.f32.mrb[0].mxu0
  %1340 = vmatprep.mubr.f32.mxu0 0.0
  %1341 = vmatmul.mubr.f32.gmra.mrb[0].mxu0 %v1267
  %v1342 = vpop.f32.mrb[0].mxu0
  %v1343 = vadd.f32 %v784, %v1342
  %v1344 = vpop.f32.mrb[0].mxu0
  %1345 = vdwg.mxu0
  %v1346 = vcombine.low %v1000, %v999
  %v1347 = vcombine.low %v1001, %v1008
  %v1349 = vunpack.c.l.s4 1983009808
  %v1350 = vunpack.c.0.s8 %v1349
  %v1351 = vlaneseq
  %v1352 = vshrl.u32 %v1351, 7
  %v1353 = vsub.s32 %v1350, %v1352
  %v1354 = vrot.slane %v1346, %v1353
  %v1356 = vunpack.c.l.s4 1983009808
  %v1357 = vunpack.c.0.s8 %v1356
  %v1358 = vlaneseq
  %v1359 = vshrl.u32 %v1358, 7
  %v1360 = vsub.s32 %v1357, %v1359
  %v1361 = vrot.slane %v1347, %v1360
  %v1362 = vcombine.low %v1354, %v1361
  %v1364 = vunpack.c.l.s4 1983009808
  %v1365 = vunpack.c.0.s8 %v1364
  %v1366 = vlaneseq
  %v1367 = vshrl.u32 %v1366, 7
  %v1368 = vsub.s32 %v1365, %v1367
  %v1369 = vrot.slane %v1009, %v1368
  %v1372 = vsel %vm529, %v1236, 0
  %v1375 = vsel %vm529, %v1237, 0
  %v1377 = vsel %vm536, %v1369, 0
  %1379 = vmatprep.subr.mxu0 0.0
  %1380 = vmatpush1.msra.mxu0 %v1362
  %1381 = vmatprep.subr.mxu0 0.0
  %1382 = vmatpush1.msra.mxu0 %v1377
  %1383 = vmatprep.subr.mxu0 0.0
  %1384 = vmatpush1.msra.mxu0 0.0
  %1385 = vmatprep.subr.mxu0 0.0
  %1386 = vmatpush1.msra.mxu0 0.0
  %1387 = vmatprep.subr.mxu0 0.0
  %1388 = vmatpush1.msra.mxu0 0.0
  %1389 = vmatprep.subr.mxu0 0.0
  %1390 = vmatpush1.msra.mxu0 0.0
  %1391 = vmatprep.subr.mxu0 0.0
  %1392 = vmatpush1.msra.mxu0 0.0
  %1393 = vmatprep.subr.mxu0 0.0
  %1394 = vmatpush1.msra.mxu0 0.0
  %1395 = vmatprep.subr.mxu0 0.0
  %1396 = vmatpush1.msra.mxu0 0.0
  %1397 = vmatprep.subr.mxu0 0.0
  %1398 = vmatpush1.msra.mxu0 0.0
  %1399 = vmatprep.subr.mxu0 0.0
  %1400 = vmatpush1.msra.mxu0 0.0
  %1401 = vmatprep.subr.mxu0 0.0
  %1402 = vmatpush1.msra.mxu0 0.0
  %1403 = vmatprep.subr.mxu0 0.0
  %1404 = vmatpush1.msra.mxu0 0.0
  %1405 = vmatprep.subr.mxu0 0.0
  %1406 = vmatpush1.msra.mxu0 0.0
  %1407 = vmatprep.subr.mxu0 0.0
  %1408 = vmatpush1.msra.mxu0 0.0
  %1409 = vmatprep.subr.mxu0 0.0
  %1410 = vmatpush1.msra.mxu0 0.0
  %1411 = vmatprep.subr.mxu0 0.0
  %1412 = vmatpush1.msra.mxu0 0.0
  %1413 = vmatprep.subr.mxu0 0.0
  %1414 = vmatpush1.msra.mxu0 0.0
  %1415 = vmatprep.subr.mxu0 0.0
  %1416 = vmatpush1.msra.mxu0 0.0
  %1417 = vmatprep.subr.mxu0 0.0
  %1418 = vmatpush1.msra.mxu0 0.0
  %1419 = vmatprep.subr.mxu0 0.0
  %1420 = vmatpush1.msra.mxu0 0.0
  %1421 = vmatprep.subr.mxu0 0.0
  %1422 = vmatpush1.msra.mxu0 0.0
  %1423 = vmatprep.subr.mxu0 0.0
  %1424 = vmatpush1.msra.mxu0 0.0
  %1425 = vmatprep.subr.mxu0 0.0
  %1426 = vmatpush1.msra.mxu0 0.0
  %1427 = vmatprep.subr.mxu0 0.0
  %1428 = vmatpush1.msra.mxu0 0.0
  %1429 = vmatprep.subr.mxu0 0.0
  %1430 = vmatpush1.msra.mxu0 0.0
  %1431 = vmatprep.subr.mxu0 0.0
  %1432 = vmatpush1.msra.mxu0 0.0
  %1433 = vmatprep.subr.mxu0 0.0
  %1434 = vmatpush1.msra.mxu0 0.0
  %1435 = vmatprep.subr.mxu0 0.0
  %1436 = vmatpush1.msra.mxu0 0.0
  %1437 = vmatprep.subr.mxu0 0.0
  %1438 = vmatpush1.msra.mxu0 0.0
  %1439 = vmatprep.subr.mxu0 0.0
  %1440 = vmatpush1.msra.mxu0 0.0
  %1441 = vmatprep.subr.mxu0 0.0
  %1442 = vmatpush1.msra.mxu0 0.0
  %1443 = vmatprep.mubr.f32.mxu0 0.0
  %1444 = vmatmul.mubr.f32.gmra.mrb[0].mxu0 %v1372
  %v1445 = vpop.f32.mrb[0].mxu0
  %v1446 = vadd.f32 %v783, %v1445
  %v1447 = vpop.f32.mrb[0].mxu0
  %1448 = vmatprep.mubr.f32.mxu0 0.0
  %1449 = vmatmul.mubr.f32.gmra.mrb[0].mxu0 %v1375
  %v1450 = vpop.f32.mrb[0].mxu0
  %v1451 = vadd.f32 %v784, %v1450
  %v1452 = vpop.f32.mrb[0].mxu0
  %1453 = vdwg.mxu0
  %s1454 = scalar_lea.vmem %s3, 64
  %v1455 = vld [vmem:[%s1454] sm:$0xff]
  %v1456 = vld [vmem:[%s1454 + $0x8] sm:$0x3]
  %s1457 = scalar_lea.vmem %s3, 80
  %v1458 = vld [vmem:[%s1457] sm:$0xff]
  %v1459 = vld [vmem:[%s1457 + $0x8] sm:$0x3]
  %v1460 = vsel %vm133, %v1338, 0.0
  %v1461 = vsel %vm133, %v1446, 0.0
  %v1462 = vadd.f32 %v1460, %v1461
  %v1463 = vsel %vm430, %v1343, 0.0
  %v1464 = vsel %vm430, %v1451, 0.0
  %v1465 = vadd.f32 %v1463, %v1464
  %v1466 = vmul.f32 %v1462, %v734
  %v1467 = vmul.f32 %v1465, %v734
  %v1468 = vsub.f32 %v1338, %v1466
  %v1469 = vsub.f32 %v1343, %v1467
  %v1470 = vsub.f32 %v1446, %v1466
  %v1471 = vsub.f32 %v1451, %v1467
  %v1472 = vmul.f32 %v1468, %v1468
  %v1473 = vmul.f32 %v1469, %v1469
  %v1474 = vmul.f32 %v1470, %v1470
  %v1475 = vmul.f32 %v1471, %v1471
  %v1476 = vsel %vm133, %v1472, 0.0
  %v1477 = vsel %vm133, %v1474, 0.0
  %v1478 = vadd.f32 %v1476, %v1477
  %v1479 = vsel %vm430, %v1473, 0.0
  %v1480 = vsel %vm430, %v1475, 0.0
  %v1481 = vadd.f32 %v1479, %v1480
  %v1482 = vmul.f32 %v1478, %v734
  %v1483 = vmul.f32 %v1481, %v734
  %v1484 = vadd.f32 %v1482, 1e-05
  %v1485 = vadd.f32 %v1483, 1e-05
  %v1486 = vrsqrt.pop %v1484
  %v1487 = vrsqrt.pop %v1485
  %v1488 = vmul.f32 %v1468, %v1486
  %v1489 = vmul.f32 %v1469, %v1487
  %v1490 = vmul.f32 %v1470, %v1486
  %v1491 = vmul.f32 %v1471, %v1487
  %v1492 = vmul.f32 %v1488, %v1455
  %v1493 = vmul.f32 %v1489, %v1456
  %v1494 = vmul.f32 %v1490, %v1455
  %v1495 = vmul.f32 %v1491, %v1456
  %v1496 = vadd.f32 %v1492, %v1458
  %v1497 = vadd.f32 %v1493, %v1459
  %v1498 = vadd.f32 %v1494, %v1458
  %v1499 = vadd.f32 %v1495, %v1459
  %v1500 = vmax.f32 %v1496, 0.0
  %v1501 = vmax.f32 %v1497, 0.0
  %v1502 = vmax.f32 %v1498, 0.0
  %v1503 = vmax.f32 %v1499, 0.0
  %v1504 = vadd.f32 %v1500, %v1338
  %v1505 = vadd.f32 %v1501, %v1343
  %v1506 = vadd.f32 %v1502, %v1446
  %v1507 = vadd.f32 %v1503, %v1451
  %v1508 = vadd.f32 %v1504, %v17
  %v1509 = vadd.f32 %v1505, %v18
  %v1510 = vadd.f32 %v1506, %v19
  %v1511 = vadd.f32 %v1507, %v20
  %1512 = vst.msk [vmem:[%s4] sm:$0xff] %vm133, %v1508
  %1513 = vst.msk [vmem:[%s4 + $0x8] sm:$0x3] %vm430, %v1509
  %1514 = vst.msk [vmem:[%s4 + $0x10] sm:$0xff] %vm133, %v1510
  %1515 = vst.msk [vmem:[%s4 + $0x18] sm:$0x3] %vm430, %v1511
  // Predicated region
  $region18: #{tpu_custom_call.1} parent=0 // pred_check
    _
  $region19: #{tpu_custom_call.1} parent=0 // pred_check_branch
    %1517 = sbr.rel (0) target = $region21
  $region20: #{tpu_custom_call.1} parent=0 // pred_region
    _
  $region21: #{tpu_custom_call.1} parent=0 // pred_fallthru
    _
  // Predicated region
  $region22: #{tpu_custom_call.1} parent=0 // pred_check
    _
  $region23: #{tpu_custom_call.1} parent=0 // pred_check_branch
    %1519 = sbr.rel (0) target = $region25
  $region24: #{tpu_custom_call.1} parent=0 // pred_region
    _
  $region25: #{tpu_custom_call.1} parent=0 // pred_fallthru
    _

</llo_original>
